<compile_context>
chip_gen: v7x
topology: tpu7x:2x2x1
jax: 0.10.0
libtpu: 0.0.40
codegen_flags: <defaults>
</compile_context>

<pallas_src>
import jax
import jax.numpy as jnp
from jax.experimental import pallas as pl
from jax.experimental.pallas import tpu as pltpu

KSIZE = 7
PAD = 3            # conv padding (each side)
HALO = 2 * PAD     # input halo per side needed for conv1 o conv2 (3 + 3)


def resnet_block_kernel(x_ref, xh_ref, w1_ref, b1_ref, w2_ref, b2_ref, o_ref,
                        xpad_ref, hpad_ref):
    """One (batch, L-tile) step of the fused ResNetBlock.

    x_ref    : (C, LT)            input core block (also the residual)
    xh_ref   : (C, 2*HALO)        left halo (6 cols) ++ right halo (6 cols)
    w1_ref   : (K, P, C)   bf16   conv1 weight, BN1 scale folded, tap-major
    b1_ref   : (P, 1)      f32    folded BN1 shift
    w2_ref   : (K, P, P)   bf16   conv2 weight, BN2 scale folded, tap-major
    b2_ref   : (P, 1)      f32    folded BN2 shift
    o_ref    : (P, LT)            output block
    xpad_ref : (C, LT+2*HALO) bf16 scratch: halo'd input tile (cast once)
    hpad_ref : (P, LT+2*PAD)  bf16 scratch: conv1 activation incl. halo
    """
    C, LT = x_ref.shape
    P = o_ref.shape[0]
    l = pl.program_id(1)
    nl = pl.num_programs(1)

    # ---- assemble halo'd bf16 input tile (single f32->bf16 cast per elem) --
    xpad_ref[:, 0:HALO] = xh_ref[:, 0:HALO].astype(jnp.bfloat16)
    xpad_ref[:, HALO:HALO + LT] = x_ref[...].astype(jnp.bfloat16)
    xpad_ref[:, HALO + LT:HALO + LT + HALO] = \
        xh_ref[:, HALO:2 * HALO].astype(jnp.bfloat16)

    # ---- conv1 (+ folded BN1 scale) over LT + 2*PAD columns ----------------
    # (the 3-wide activation halo is needed by conv2).  7 accumulating MXU
    # matmuls against lane-shifted slices of the bf16 padded scratch.
    w1len = LT + 2 * PAD
    acc1 = jnp.dot(w1_ref[0], xpad_ref[:, 0:w1len],
                   preferred_element_type=jnp.float32)
    for k in range(1, KSIZE):
        acc1 = acc1 + jnp.dot(w1_ref[k], xpad_ref[:, k:k + w1len],
                              preferred_element_type=jnp.float32)
    h1 = jnp.maximum(acc1 + b1_ref[...], 0.0)           # BN1 shift + ReLU (f32)
    hpad_ref[...] = h1.astype(jnp.bfloat16)              # cast once

    # conv2's zero padding exists only at the GLOBAL sequence edges: conv1
    # activations do not exist for columns < 0 or >= L, so zero those strips
    # on the first / last L tile only (interior tiles keep real halo data).
    @pl.when(l == 0)
    def _():
        hpad_ref[:, 0:PAD] = jnp.zeros((P, PAD), jnp.bfloat16)

    @pl.when(l == nl - 1)
    def _():
        hpad_ref[:, PAD + LT:PAD + LT + PAD] = jnp.zeros((P, PAD), jnp.bfloat16)

    # ---- conv2 (+ folded BN2 scale) + shift + residual + ReLU --------------
    acc2 = jnp.dot(w2_ref[0], hpad_ref[:, 0:LT],
                   preferred_element_type=jnp.float32)
    for k in range(1, KSIZE):
        acc2 = acc2 + jnp.dot(w2_ref[k], hpad_ref[:, k:k + LT],
                              preferred_element_type=jnp.float32)
    # residual: re-read x_ref (VMEM-resident) instead of holding it live.
    out = acc2 + b2_ref[...] + x_ref[...].astype(jnp.float32)
    o_ref[...] = jnp.maximum(out, 0.0).astype(o_ref.dtype)


def _l_tile_footprint(lt, C, P, itemsize):
    """Approx per-step VMEM bytes (double-buffered blocks + scratch + weights)."""
    return (2 * C * lt * itemsize            # x core block, 2-deep pipeline
            + 2 * P * lt * itemsize          # out block, 2-deep pipeline
            + 2 * C * 2 * HALO * itemsize    # halo block
            + C * (lt + 2 * HALO) * 2        # xpad scratch (bf16)
            + P * (lt + 2 * PAD) * 2         # hpad scratch (bf16)
            + KSIZE * (P * C + P * P) * 2    # weights (bf16)
            + 2 * P * 4)                     # shifts


def _choose_l_tile(L, C, P, itemsize, budget_bytes, lt_max):
    # Prefer 256-multiples (v6e/v7x MXU lane alignment), then 128 (v5e / vreg).
    for step in (256, 128):
        lt = (min(L, lt_max) // step) * step
        while lt >= step:
            if L % lt == 0 and _l_tile_footprint(lt, C, P, itemsize) <= budget_bytes:
                return lt
            lt -= step
    return L   # fallback: single tile over the full length (small / odd L)


def resnet_block(x, w1, scale1, shift1, w2, scale2, shift2, *, lt_max=1024):
    """x: (N, C, L). Returns (N, P, L). Requires C == P (identity residual)."""
    N, C, L = x.shape
    P = w1.shape[0]
    assert w1.shape == (P, C, KSIZE) and w2.shape == (P, P, KSIZE)
    assert C == P, "identity residual requires inplanes == planes"

    # Fold BN scale into conv weights; tap-major (K, P, C) so each tap is a
    # contiguous (P, C) matmul LHS.  Matmul operands are bf16 (f32 accum).
    w1_k = jnp.transpose(w1 * scale1[:, None, None], (2, 0, 1)).astype(jnp.bfloat16)
    w2_k = jnp.transpose(w2 * scale2[:, None, None], (2, 0, 1)).astype(jnp.bfloat16)
    b1 = shift1.reshape(P, 1).astype(jnp.float32)
    b2 = shift2.reshape(P, 1).astype(jnp.float32)

    # ---- per-generation VMEM budget ----------------------------------------
    try:
        vmem_cap = int(pltpu.get_tpu_info().vmem_capacity_bytes)
    except Exception:
        vmem_cap = 64 * 1024 * 1024          # conservative (v7x-sized) fallback
    vmem_limit = min(int(0.75 * vmem_cap), 100 * 1024 * 1024)

    itemsize = jnp.dtype(x.dtype).itemsize
    LT = _choose_l_tile(L, C, P, itemsize, budget_bytes=vmem_limit // 2,
                        lt_max=lt_max)
    nL = L // LT

    # ---- tiny host-side halo array: (N, nL, C, 2*HALO) ----------------------
    # Left halo = x[:, :, l*LT-6 : l*LT], right halo = x[:, :, (l+1)*LT : +6],
    # zeros outside [0, L).  Only ~2*HALO/LT of x is duplicated.
    li = jnp.arange(nL)[:, None] * LT
    idx = jnp.concatenate([li + jnp.arange(-HALO, 0)[None, :],
                           li + LT + jnp.arange(0, HALO)[None, :]], axis=1)
    valid = (idx >= 0) & (idx < L)
    xh = jnp.take(x, jnp.clip(idx, 0, L - 1), axis=2)        # (N, C, nL, 2*HALO)
    xh = jnp.where(valid[None, None, :, :], xh, jnp.zeros((), x.dtype))
    xh = jnp.transpose(xh, (0, 2, 1, 3))                     # (N, nL, C, 2*HALO)

    flops = 2 * KSIZE * N * L * (P * C + P * P)
    bytes_accessed = (N * C * L * itemsize                   # x (core, once)
                      + N * nL * C * 2 * HALO * itemsize     # halos
                      + N * P * L * itemsize                 # out
                      + KSIZE * (P * C + P * P) * 2 + 2 * P * 4)

    return pl.pallas_call(
        resnet_block_kernel,
        out_shape=jax.ShapeDtypeStruct((N, P, L), x.dtype),
        grid_spec=pltpu.PrefetchScalarGridSpec(
            num_scalar_prefetch=0,
            grid=(N, nL),
            in_specs=[
                pl.BlockSpec((pl.Squeezed(), C, LT), lambda n, l: (n, 0, l)),
                pl.BlockSpec((pl.Squeezed(), pl.Squeezed(), C, 2 * HALO),
                             lambda n, l: (n, l, 0, 0)),
                pl.BlockSpec((KSIZE, P, C), lambda n, l: (0, 0, 0)),
                pl.BlockSpec((P, 1), lambda n, l: (0, 0)),
                pl.BlockSpec((KSIZE, P, P), lambda n, l: (0, 0, 0)),
                pl.BlockSpec((P, 1), lambda n, l: (0, 0)),
            ],
            out_specs=pl.BlockSpec((pl.Squeezed(), P, LT), lambda n, l: (n, 0, l)),
            scratch_shapes=[
                pltpu.VMEM((C, LT + 2 * HALO), jnp.bfloat16),   # xpad
                pltpu.VMEM((P, LT + 2 * PAD), jnp.bfloat16),    # hpad
            ],
        ),
        compiler_params=pltpu.CompilerParams(
            dimension_semantics=("parallel", "parallel"),
            vmem_limit_bytes=vmem_limit),
        cost_estimate=pl.CostEstimate(
            flops=flops, transcendentals=0, bytes_accessed=bytes_accessed),
    )(x, xh, w1_k, b1, w2_k, b2)


# ------------------------- pure-JAX reference -------------------------------
def _conv1d_ref(x, w):
    return jax.lax.conv_general_dilated(
        x, w, window_strides=(1,), padding=[(PAD, PAD)],
        dimension_numbers=("NCH", "OIH", "NCH"))


def resnet_block_ref(x, w1, scale1, shift1, w2, scale2, shift2):
    h = _conv1d_ref(x, w1)
    h = h * scale1[None, :, None] + shift1[None, :, None]
    h = jnp.maximum(h, 0.0)
    h = _conv1d_ref(h, w2)
    h = h * scale2[None, :, None] + shift2[None, :, None]
    h = h + x
    return jnp.maximum(h, 0.0)


if __name__ == "__main__":
    # Small but lane-dense shapes: L multiple of 128, lt_max=256 -> 2 L tiles,
    # grid = (2, 2), exercising the interior-halo and global-edge paths.
    N, C, L = 2, 8, 512
    P = C
    eps = 1e-5

    key = jax.random.PRNGKey(0)
    ks = jax.random.split(key, 10)

    x = jax.random.normal(ks[0], (N, C, L), jnp.float32)

    # conv weights (bias=False)
    w1 = 0.1 * jax.random.normal(ks[1], (P, C, KSIZE), jnp.float32)
    w2 = 0.1 * jax.random.normal(ks[2], (P, P, KSIZE), jnp.float32)

    # BatchNorm1d params / running stats (inference), folded to scale/shift
    gamma1 = 1.0 + 0.1 * jax.random.normal(ks[3], (P,), jnp.float32)
    beta1 = 0.1 * jax.random.normal(ks[4], (P,), jnp.float32)
    rmean1 = 0.1 * jax.random.normal(ks[5], (P,), jnp.float32)
    rvar1 = 1.0 + 0.1 * jax.random.uniform(ks[6], (P,), jnp.float32)
    gamma2 = 1.0 + 0.1 * jax.random.normal(ks[7], (P,), jnp.float32)
    beta2 = 0.1 * jax.random.normal(ks[8], (P,), jnp.float32)
    rmean2 = 0.1 * jax.random.normal(ks[9], (P,), jnp.float32)
    rvar2 = 1.0 + 0.05 * jnp.arange(P, dtype=jnp.float32) / P

    scale1 = gamma1 / jnp.sqrt(rvar1 + eps)
    shift1 = beta1 - rmean1 * scale1
    scale2 = gamma2 / jnp.sqrt(rvar2 + eps)
    shift2 = beta2 - rmean2 * scale2

    out = resnet_block(x, w1, scale1, shift1, w2, scale2, shift2, lt_max=256)
    out = jax.block_until_ready(out)

    ref = resnet_block_ref(x, w1, scale1, shift1, w2, scale2, shift2)
    assert out.shape == (N, P, L)
    # bf16 MXU operands (weights + inter-conv activations) with f32 accumulation
    # -> loosened tolerance; acceptable for inference.
    assert jnp.allclose(out, ref, rtol=5e-2, atol=5e-2), "mismatch vs reference"

    print("KERNEL_OK")
</pallas_src>

<mosaic_0001>
module attributes {stable_mosaic.version = 11 : i64} {
  func.func @resnet_block_kernel(%arg0: i32, %arg1: i32, %arg2: memref<1x8x256xf32, #tpu.memory_space<vmem>>, %arg3: memref<1x1x8x12xf32, #tpu.memory_space<vmem>>, %arg4: memref<7x8x8xbf16, #tpu.memory_space<vmem>>, %arg5: memref<8x1xf32, #tpu.memory_space<vmem>>, %arg6: memref<7x8x8xbf16, #tpu.memory_space<vmem>>, %arg7: memref<8x1xf32, #tpu.memory_space<vmem>>, %arg8: memref<1x8x256xf32, #tpu.memory_space<vmem>>, %arg9: memref<8x268xbf16, #tpu.memory_space<vmem>>, %arg10: memref<8x262xbf16, #tpu.memory_space<vmem>>) attributes {dimension_semantics = [#tpu.dimension_semantics<parallel>, #tpu.dimension_semantics<parallel>], iteration_bounds = array<i64: 2, 2>, scalar_prefetch = 0 : i64, scratch_operands = 2 : i64, tpu.core_type = #tpu.core_type<tc>, window_params = [{transform_indices = @transform_0, window_bounds = array<i64: 1, 8, 256>}, {transform_indices = @transform_1, window_bounds = array<i64: 1, 1, 8, 12>}, {pipeline_mode = #tpu.pipeline_mode<synchronous>, transform_indices = @transform_2, window_bounds = array<i64: 7, 8, 8>}, {pipeline_mode = #tpu.pipeline_mode<synchronous>, transform_indices = @transform_3, window_bounds = array<i64: 8, 1>}, {pipeline_mode = #tpu.pipeline_mode<synchronous>, transform_indices = @transform_4, window_bounds = array<i64: 7, 8, 8>}, {pipeline_mode = #tpu.pipeline_mode<synchronous>, transform_indices = @transform_5, window_bounds = array<i64: 8, 1>}, {transform_indices = @transform_6, window_bounds = array<i64: 1, 8, 256>}]} {
    %c0 = arith.constant 0 : index
    %c0_0 = arith.constant 0 : index
    %c0_1 = arith.constant 0 : index
    %c0_2 = arith.constant 0 : index
    %0 = vector.load %arg3[%c0, %c0_0, %c0_1, %c0_2] : memref<1x1x8x12xf32, #tpu.memory_space<vmem>>, vector<1x1x8x6xf32>
    %1 = vector.shape_cast %0 : vector<1x1x8x6xf32> to vector<8x6xf32>
    %2 = arith.truncf %1 : vector<8x6xf32> to vector<8x6xbf16>
    %c0_3 = arith.constant 0 : index
    %c0_4 = arith.constant 0 : index
    %3 = vector.load %arg9[%c0_3, %c0_4] : memref<8x268xbf16, #tpu.memory_space<vmem>>, vector<8x6xbf16>
    tpu.vector_store %arg9[%c0_3, %c0_4], %2 {strides = array<i32>} : memref<8x268xbf16, #tpu.memory_space<vmem>>, vector<8x6xbf16>,
    %c0_5 = arith.constant 0 : index
    %c0_6 = arith.constant 0 : index
    %c0_7 = arith.constant 0 : index
    %4 = vector.load %arg2[%c0_5, %c0_6, %c0_7] : memref<1x8x256xf32, #tpu.memory_space<vmem>>, vector<1x8x256xf32>
    %5 = vector.shape_cast %4 : vector<1x8x256xf32> to vector<8x256xf32>
    %6 = arith.truncf %5 : vector<8x256xf32> to vector<8x256xbf16>
    %c0_8 = arith.constant 0 : index
    %c6 = arith.constant 6 : index
    %7 = vector.load %arg9[%c0_8, %c6] : memref<8x268xbf16, #tpu.memory_space<vmem>>, vector<8x256xbf16>
    tpu.vector_store %arg9[%c0_8, %c6], %6 {strides = array<i32>} : memref<8x268xbf16, #tpu.memory_space<vmem>>, vector<8x256xbf16>,
    %c0_9 = arith.constant 0 : index
    %c0_10 = arith.constant 0 : index
    %c0_11 = arith.constant 0 : index
    %c6_12 = arith.constant 6 : index
    %8 = vector.load %arg3[%c0_9, %c0_10, %c0_11, %c6_12] : memref<1x1x8x12xf32, #tpu.memory_space<vmem>>, vector<1x1x8x6xf32>
    %9 = vector.shape_cast %8 : vector<1x1x8x6xf32> to vector<8x6xf32>
    %10 = arith.truncf %9 : vector<8x6xf32> to vector<8x6xbf16>
    %c0_13 = arith.constant 0 : index
    %c262 = arith.constant 262 : index
    %11 = vector.load %arg9[%c0_13, %c262] : memref<8x268xbf16, #tpu.memory_space<vmem>>, vector<8x6xbf16>
    tpu.vector_store %arg9[%c0_13, %c262], %10 {strides = array<i32>} : memref<8x268xbf16, #tpu.memory_space<vmem>>, vector<8x6xbf16>,
    %c0_14 = arith.constant 0 : index
    %c0_15 = arith.constant 0 : index
    %c0_16 = arith.constant 0 : index
    %12 = vector.load %arg4[%c0_14, %c0_15, %c0_16] : memref<7x8x8xbf16, #tpu.memory_space<vmem>>, vector<1x8x8xbf16>
    %13 = vector.shape_cast %12 : vector<1x8x8xbf16> to vector<8x8xbf16>
    %c0_17 = arith.constant 0 : index
    %c0_18 = arith.constant 0 : index
    %14 = vector.load %arg9[%c0_17, %c0_18] : memref<8x268xbf16, #tpu.memory_space<vmem>>, vector<8x262xbf16>
    %cst = arith.constant dense<0.000000e+00> : vector<8x262xf32>
    %15 = tpu.matmul %13, %14, %cst {dimension_numbers = #tpu.dot_dimension_numbers<[1], [0], [0], [1], [0, 0, 1, 1], [], []>} : vector<8x8xbf16>, vector<8x262xbf16>, vector<8x262xf32> -> vector<8x262xf32>
    %c1 = arith.constant 1 : index
    %c0_19 = arith.constant 0 : index
    %c0_20 = arith.constant 0 : index
    %16 = vector.load %arg4[%c1, %c0_19, %c0_20] : memref<7x8x8xbf16, #tpu.memory_space<vmem>>, vector<1x8x8xbf16>
    %17 = vector.shape_cast %16 : vector<1x8x8xbf16> to vector<8x8xbf16>
    %c0_21 = arith.constant 0 : index
    %c1_22 = arith.constant 1 : index
    %18 = vector.load %arg9[%c0_21, %c1_22] : memref<8x268xbf16, #tpu.memory_space<vmem>>, vector<8x262xbf16>
    %cst_23 = arith.constant dense<0.000000e+00> : vector<8x262xf32>
    %19 = tpu.matmul %17, %18, %cst_23 {dimension_numbers = #tpu.dot_dimension_numbers<[1], [0], [0], [1], [0, 0, 1, 1], [], []>} : vector<8x8xbf16>, vector<8x262xbf16>, vector<8x262xf32> -> vector<8x262xf32>
    %20 = arith.addf %15, %19 : vector<8x262xf32>
    %c2 = arith.constant 2 : index
    %c0_24 = arith.constant 0 : index
    %c0_25 = arith.constant 0 : index
    %21 = vector.load %arg4[%c2, %c0_24, %c0_25] : memref<7x8x8xbf16, #tpu.memory_space<vmem>>, vector<1x8x8xbf16>
    %22 = vector.shape_cast %21 : vector<1x8x8xbf16> to vector<8x8xbf16>
    %c0_26 = arith.constant 0 : index
    %c2_27 = arith.constant 2 : index
    %23 = vector.load %arg9[%c0_26, %c2_27] : memref<8x268xbf16, #tpu.memory_space<vmem>>, vector<8x262xbf16>
    %cst_28 = arith.constant dense<0.000000e+00> : vector<8x262xf32>
    %24 = tpu.matmul %22, %23, %cst_28 {dimension_numbers = #tpu.dot_dimension_numbers<[1], [0], [0], [1], [0, 0, 1, 1], [], []>} : vector<8x8xbf16>, vector<8x262xbf16>, vector<8x262xf32> -> vector<8x262xf32>
    %25 = arith.addf %20, %24 : vector<8x262xf32>
    %c3 = arith.constant 3 : index
    %c0_29 = arith.constant 0 : index
    %c0_30 = arith.constant 0 : index
    %26 = vector.load %arg4[%c3, %c0_29, %c0_30] : memref<7x8x8xbf16, #tpu.memory_space<vmem>>, vector<1x8x8xbf16>
    %27 = vector.shape_cast %26 : vector<1x8x8xbf16> to vector<8x8xbf16>
    %c0_31 = arith.constant 0 : index
    %c3_32 = arith.constant 3 : index
    %28 = vector.load %arg9[%c0_31, %c3_32] : memref<8x268xbf16, #tpu.memory_space<vmem>>, vector<8x262xbf16>
    %cst_33 = arith.constant dense<0.000000e+00> : vector<8x262xf32>
    %29 = tpu.matmul %27, %28, %cst_33 {dimension_numbers = #tpu.dot_dimension_numbers<[1], [0], [0], [1], [0, 0, 1, 1], [], []>} : vector<8x8xbf16>, vector<8x262xbf16>, vector<8x262xf32> -> vector<8x262xf32>
    %30 = arith.addf %25, %29 : vector<8x262xf32>
    %c4 = arith.constant 4 : index
    %c0_34 = arith.constant 0 : index
    %c0_35 = arith.constant 0 : index
    %31 = vector.load %arg4[%c4, %c0_34, %c0_35] : memref<7x8x8xbf16, #tpu.memory_space<vmem>>, vector<1x8x8xbf16>
    %32 = vector.shape_cast %31 : vector<1x8x8xbf16> to vector<8x8xbf16>
    %c0_36 = arith.constant 0 : index
    %c4_37 = arith.constant 4 : index
    %33 = vector.load %arg9[%c0_36, %c4_37] : memref<8x268xbf16, #tpu.memory_space<vmem>>, vector<8x262xbf16>
    %cst_38 = arith.constant dense<0.000000e+00> : vector<8x262xf32>
    %34 = tpu.matmul %32, %33, %cst_38 {dimension_numbers = #tpu.dot_dimension_numbers<[1], [0], [0], [1], [0, 0, 1, 1], [], []>} : vector<8x8xbf16>, vector<8x262xbf16>, vector<8x262xf32> -> vector<8x262xf32>
    %35 = arith.addf %30, %34 : vector<8x262xf32>
    %c5 = arith.constant 5 : index
    %c0_39 = arith.constant 0 : index
    %c0_40 = arith.constant 0 : index
    %36 = vector.load %arg4[%c5, %c0_39, %c0_40] : memref<7x8x8xbf16, #tpu.memory_space<vmem>>, vector<1x8x8xbf16>
    %37 = vector.shape_cast %36 : vector<1x8x8xbf16> to vector<8x8xbf16>
    %c0_41 = arith.constant 0 : index
    %c5_42 = arith.constant 5 : index
    %38 = vector.load %arg9[%c0_41, %c5_42] : memref<8x268xbf16, #tpu.memory_space<vmem>>, vector<8x262xbf16>
    %cst_43 = arith.constant dense<0.000000e+00> : vector<8x262xf32>
    %39 = tpu.matmul %37, %38, %cst_43 {dimension_numbers = #tpu.dot_dimension_numbers<[1], [0], [0], [1], [0, 0, 1, 1], [], []>} : vector<8x8xbf16>, vector<8x262xbf16>, vector<8x262xf32> -> vector<8x262xf32>
    %40 = arith.addf %35, %39 : vector<8x262xf32>
    %c6_44 = arith.constant 6 : index
    %c0_45 = arith.constant 0 : index
    %c0_46 = arith.constant 0 : index
    %41 = vector.load %arg4[%c6_44, %c0_45, %c0_46] : memref<7x8x8xbf16, #tpu.memory_space<vmem>>, vector<1x8x8xbf16>
    %42 = vector.shape_cast %41 : vector<1x8x8xbf16> to vector<8x8xbf16>
    %c0_47 = arith.constant 0 : index
    %c6_48 = arith.constant 6 : index
    %43 = vector.load %arg9[%c0_47, %c6_48] : memref<8x268xbf16, #tpu.memory_space<vmem>>, vector<8x262xbf16>
    %cst_49 = arith.constant dense<0.000000e+00> : vector<8x262xf32>
    %44 = tpu.matmul %42, %43, %cst_49 {dimension_numbers = #tpu.dot_dimension_numbers<[1], [0], [0], [1], [0, 0, 1, 1], [], []>} : vector<8x8xbf16>, vector<8x262xbf16>, vector<8x262xf32> -> vector<8x262xf32>
    %45 = arith.addf %40, %44 : vector<8x262xf32>
    %c0_50 = arith.constant 0 : index
    %c0_51 = arith.constant 0 : index
    %46 = vector.load %arg5[%c0_50, %c0_51] : memref<8x1xf32, #tpu.memory_space<vmem>>, vector<8x1xf32>
    %47 = vector.broadcast %46 : vector<8x1xf32> to vector<8x262xf32>
    %48 = arith.addf %45, %47 : vector<8x262xf32>
    %cst_52 = arith.constant 0.000000e+00 : f32
    %49 = vector.broadcast %cst_52 : f32 to vector<8x262xf32>
    %50 = arith.maximumf %48, %49 : vector<8x262xf32>
    %51 = arith.truncf %50 : vector<8x262xf32> to vector<8x262xbf16>
    %c0_53 = arith.constant 0 : index
    %c0_54 = arith.constant 0 : index
    %52 = vector.load %arg10[%c0_53, %c0_54] : memref<8x262xbf16, #tpu.memory_space<vmem>>, vector<8x262xbf16>
    tpu.vector_store %arg10[%c0_53, %c0_54], %51 {strides = array<i32>} : memref<8x262xbf16, #tpu.memory_space<vmem>>, vector<8x262xbf16>,
    %c0_i32 = arith.constant 0 : i32
    %53 = arith.cmpi eq, %arg1, %c0_i32 : i32
    %54 = arith.extui %53 : i1 to i32
    %c0_i32_55 = arith.constant 0 : i32
    %55 = arith.cmpi ne, %54, %c0_i32_55 : i32
    scf.if %55 {
      %cst_108 = arith.constant 0.000000e+00 : bf16
      %104 = vector.broadcast %cst_108 : bf16 to vector<8x3xbf16>
      %c0_109 = arith.constant 0 : index
      %c0_110 = arith.constant 0 : index
      %105 = vector.load %arg10[%c0_109, %c0_110] : memref<8x262xbf16, #tpu.memory_space<vmem>>, vector<8x3xbf16>
      tpu.vector_store %arg10[%c0_109, %c0_110], %104 {strides = array<i32>} : memref<8x262xbf16, #tpu.memory_space<vmem>>, vector<8x3xbf16>,
    } else {
    }
    %c1_i32 = arith.constant 1 : i32
    %56 = arith.cmpi eq, %arg1, %c1_i32 : i32
    %57 = arith.extui %56 : i1 to i32
    %c0_i32_56 = arith.constant 0 : i32
    %58 = arith.cmpi ne, %57, %c0_i32_56 : i32
    scf.if %58 {
      %cst_108 = arith.constant 0.000000e+00 : bf16
      %104 = vector.broadcast %cst_108 : bf16 to vector<8x3xbf16>
      %c0_109 = arith.constant 0 : index
      %c259 = arith.constant 259 : index
      %105 = vector.load %arg10[%c0_109, %c259] : memref<8x262xbf16, #tpu.memory_space<vmem>>, vector<8x3xbf16>
      tpu.vector_store %arg10[%c0_109, %c259], %104 {strides = array<i32>} : memref<8x262xbf16, #tpu.memory_space<vmem>>, vector<8x3xbf16>,
    } else {
    }
    %c0_57 = arith.constant 0 : index
    %c0_58 = arith.constant 0 : index
    %c0_59 = arith.constant 0 : index
    %59 = vector.load %arg6[%c0_57, %c0_58, %c0_59] : memref<7x8x8xbf16, #tpu.memory_space<vmem>>, vector<1x8x8xbf16>
    %60 = vector.shape_cast %59 : vector<1x8x8xbf16> to vector<8x8xbf16>
    %c0_60 = arith.constant 0 : index
    %c0_61 = arith.constant 0 : index
    %61 = vector.load %arg10[%c0_60, %c0_61] : memref<8x262xbf16, #tpu.memory_space<vmem>>, vector<8x256xbf16>
    %cst_62 = arith.constant dense<0.000000e+00> : vector<8x256xf32>
    %62 = tpu.matmul %60, %61, %cst_62 {dimension_numbers = #tpu.dot_dimension_numbers<[1], [0], [0], [1], [0, 0, 1, 1], [], []>} : vector<8x8xbf16>, vector<8x256xbf16>, vector<8x256xf32> -> vector<8x256xf32>
    %c1_63 = arith.constant 1 : index
    %c0_64 = arith.constant 0 : index
    %c0_65 = arith.constant 0 : index
    %63 = vector.load %arg6[%c1_63, %c0_64, %c0_65] : memref<7x8x8xbf16, #tpu.memory_space<vmem>>, vector<1x8x8xbf16>
    %64 = vector.shape_cast %63 : vector<1x8x8xbf16> to vector<8x8xbf16>
    %c0_66 = arith.constant 0 : index
    %c1_67 = arith.constant 1 : index
    %65 = vector.load %arg10[%c0_66, %c1_67] : memref<8x262xbf16, #tpu.memory_space<vmem>>, vector<8x256xbf16>
    %cst_68 = arith.constant dense<0.000000e+00> : vector<8x256xf32>
    %66 = tpu.matmul %64, %65, %cst_68 {dimension_numbers = #tpu.dot_dimension_numbers<[1], [0], [0], [1], [0, 0, 1, 1], [], []>} : vector<8x8xbf16>, vector<8x256xbf16>, vector<8x256xf32> -> vector<8x256xf32>
    %67 = arith.addf %62, %66 : vector<8x256xf32>
    %c2_69 = arith.constant 2 : index
    %c0_70 = arith.constant 0 : index
    %c0_71 = arith.constant 0 : index
    %68 = vector.load %arg6[%c2_69, %c0_70, %c0_71] : memref<7x8x8xbf16, #tpu.memory_space<vmem>>, vector<1x8x8xbf16>
    %69 = vector.shape_cast %68 : vector<1x8x8xbf16> to vector<8x8xbf16>
    %c0_72 = arith.constant 0 : index
    %c2_73 = arith.constant 2 : index
    %70 = vector.load %arg10[%c0_72, %c2_73] : memref<8x262xbf16, #tpu.memory_space<vmem>>, vector<8x256xbf16>
    %cst_74 = arith.constant dense<0.000000e+00> : vector<8x256xf32>
    %71 = tpu.matmul %69, %70, %cst_74 {dimension_numbers = #tpu.dot_dimension_numbers<[1], [0], [0], [1], [0, 0, 1, 1], [], []>} : vector<8x8xbf16>, vector<8x256xbf16>, vector<8x256xf32> -> vector<8x256xf32>
    %72 = arith.addf %67, %71 : vector<8x256xf32>
    %c3_75 = arith.constant 3 : index
    %c0_76 = arith.constant 0 : index
    %c0_77 = arith.constant 0 : index
    %73 = vector.load %arg6[%c3_75, %c0_76, %c0_77] : memref<7x8x8xbf16, #tpu.memory_space<vmem>>, vector<1x8x8xbf16>
    %74 = vector.shape_cast %73 : vector<1x8x8xbf16> to vector<8x8xbf16>
    %c0_78 = arith.constant 0 : index
    %c3_79 = arith.constant 3 : index
    %75 = vector.load %arg10[%c0_78, %c3_79] : memref<8x262xbf16, #tpu.memory_space<vmem>>, vector<8x256xbf16>
    %cst_80 = arith.constant dense<0.000000e+00> : vector<8x256xf32>
    %76 = tpu.matmul %74, %75, %cst_80 {dimension_numbers = #tpu.dot_dimension_numbers<[1], [0], [0], [1], [0, 0, 1, 1], [], []>} : vector<8x8xbf16>, vector<8x256xbf16>, vector<8x256xf32> -> vector<8x256xf32>
    %77 = arith.addf %72, %76 : vector<8x256xf32>
    %c4_81 = arith.constant 4 : index
    %c0_82 = arith.constant 0 : index
    %c0_83 = arith.constant 0 : index
    %78 = vector.load %arg6[%c4_81, %c0_82, %c0_83] : memref<7x8x8xbf16, #tpu.memory_space<vmem>>, vector<1x8x8xbf16>
    %79 = vector.shape_cast %78 : vector<1x8x8xbf16> to vector<8x8xbf16>
    %c0_84 = arith.constant 0 : index
    %c4_85 = arith.constant 4 : index
    %80 = vector.load %arg10[%c0_84, %c4_85] : memref<8x262xbf16, #tpu.memory_space<vmem>>, vector<8x256xbf16>
    %cst_86 = arith.constant dense<0.000000e+00> : vector<8x256xf32>
    %81 = tpu.matmul %79, %80, %cst_86 {dimension_numbers = #tpu.dot_dimension_numbers<[1], [0], [0], [1], [0, 0, 1, 1], [], []>} : vector<8x8xbf16>, vector<8x256xbf16>, vector<8x256xf32> -> vector<8x256xf32>
    %82 = arith.addf %77, %81 : vector<8x256xf32>
    %c5_87 = arith.constant 5 : index
    %c0_88 = arith.constant 0 : index
    %c0_89 = arith.constant 0 : index
    %83 = vector.load %arg6[%c5_87, %c0_88, %c0_89] : memref<7x8x8xbf16, #tpu.memory_space<vmem>>, vector<1x8x8xbf16>
    %84 = vector.shape_cast %83 : vector<1x8x8xbf16> to vector<8x8xbf16>
    %c0_90 = arith.constant 0 : index
    %c5_91 = arith.constant 5 : index
    %85 = vector.load %arg10[%c0_90, %c5_91] : memref<8x262xbf16, #tpu.memory_space<vmem>>, vector<8x256xbf16>
    %cst_92 = arith.constant dense<0.000000e+00> : vector<8x256xf32>
    %86 = tpu.matmul %84, %85, %cst_92 {dimension_numbers = #tpu.dot_dimension_numbers<[1], [0], [0], [1], [0, 0, 1, 1], [], []>} : vector<8x8xbf16>, vector<8x256xbf16>, vector<8x256xf32> -> vector<8x256xf32>
    %87 = arith.addf %82, %86 : vector<8x256xf32>
    %c6_93 = arith.constant 6 : index
    %c0_94 = arith.constant 0 : index
    %c0_95 = arith.constant 0 : index
    %88 = vector.load %arg6[%c6_93, %c0_94, %c0_95] : memref<7x8x8xbf16, #tpu.memory_space<vmem>>, vector<1x8x8xbf16>
    %89 = vector.shape_cast %88 : vector<1x8x8xbf16> to vector<8x8xbf16>
    %c0_96 = arith.constant 0 : index
    %c6_97 = arith.constant 6 : index
    %90 = vector.load %arg10[%c0_96, %c6_97] : memref<8x262xbf16, #tpu.memory_space<vmem>>, vector<8x256xbf16>
    %cst_98 = arith.constant dense<0.000000e+00> : vector<8x256xf32>
    %91 = tpu.matmul %89, %90, %cst_98 {dimension_numbers = #tpu.dot_dimension_numbers<[1], [0], [0], [1], [0, 0, 1, 1], [], []>} : vector<8x8xbf16>, vector<8x256xbf16>, vector<8x256xf32> -> vector<8x256xf32>
    %92 = arith.addf %87, %91 : vector<8x256xf32>
    %c0_99 = arith.constant 0 : index
    %c0_100 = arith.constant 0 : index
    %93 = vector.load %arg7[%c0_99, %c0_100] : memref<8x1xf32, #tpu.memory_space<vmem>>, vector<8x1xf32>
    %94 = vector.broadcast %93 : vector<8x1xf32> to vector<8x256xf32>
    %95 = arith.addf %92, %94 : vector<8x256xf32>
    %c0_101 = arith.constant 0 : index
    %c0_102 = arith.constant 0 : index
    %c0_103 = arith.constant 0 : index
    %96 = vector.load %arg2[%c0_101, %c0_102, %c0_103] : memref<1x8x256xf32, #tpu.memory_space<vmem>>, vector<1x8x256xf32>
    %97 = vector.shape_cast %96 : vector<1x8x256xf32> to vector<8x256xf32>
    %98 = arith.addf %95, %97 : vector<8x256xf32>
    %cst_104 = arith.constant 0.000000e+00 : f32
    %99 = vector.broadcast %cst_104 : f32 to vector<8x256xf32>
    %100 = arith.maximumf %98, %99 : vector<8x256xf32>
    %c0_105 = arith.constant 0 : index
    %c0_106 = arith.constant 0 : index
    %c0_107 = arith.constant 0 : index
    %101 = vector.load %arg8[%c0_105, %c0_106, %c0_107] : memref<1x8x256xf32, #tpu.memory_space<vmem>>, vector<1x8x256xf32>
    %102 = vector.shape_cast %101 : vector<1x8x256xf32> to vector<8x256xf32>
    %103 = vector.shape_cast %100 : vector<8x256xf32> to vector<1x8x256xf32>
    tpu.vector_store %arg8[%c0_105, %c0_106, %c0_107], %103 {strides = array<i32>} : memref<1x8x256xf32, #tpu.memory_space<vmem>>, vector<1x8x256xf32>,
    return
  }
  func.func @transform_0(%arg0: i32, %arg1: i32) -> (i32, i32, i32) {
    %c0_i32 = arith.constant 0 : i32
    %c0_i32_0 = arith.constant 0 : i32
    return %arg0, %c0_i32, %arg1 : i32, i32, i32
  }
  func.func @transform_1(%arg0: i32, %arg1: i32) -> (i32, i32, i32, i32) {
    %c0_i32 = arith.constant 0 : i32
    %c0_i32_0 = arith.constant 0 : i32
    %c0_i32_1 = arith.constant 0 : i32
    return %arg0, %arg1, %c0_i32, %c0_i32_0 : i32, i32, i32, i32
  }
  func.func @transform_2(%arg0: i32, %arg1: i32) -> (i32, i32, i32) {
    %c0_i32 = arith.constant 0 : i32
    %c0_i32_0 = arith.constant 0 : i32
    %c0_i32_1 = arith.constant 0 : i32
    %c0_i32_2 = arith.constant 0 : i32
    return %c0_i32, %c0_i32_0, %c0_i32_1 : i32, i32, i32
  }
  func.func @transform_3(%arg0: i32, %arg1: i32) -> (i32, i32) {
    %c0_i32 = arith.constant 0 : i32
    %c0_i32_0 = arith.constant 0 : i32
    %c0_i32_1 = arith.constant 0 : i32
    return %c0_i32, %c0_i32_0 : i32, i32
  }
  func.func @transform_4(%arg0: i32, %arg1: i32) -> (i32, i32, i32) {
    %c0_i32 = arith.constant 0 : i32
    %c0_i32_0 = arith.constant 0 : i32
    %c0_i32_1 = arith.constant 0 : i32
    %c0_i32_2 = arith.constant 0 : i32
    return %c0_i32, %c0_i32_0, %c0_i32_1 : i32, i32, i32
  }
  func.func @transform_5(%arg0: i32, %arg1: i32) -> (i32, i32) {
    %c0_i32 = arith.constant 0 : i32
    %c0_i32_0 = arith.constant 0 : i32
    %c0_i32_1 = arith.constant 0 : i32
    return %c0_i32, %c0_i32_0 : i32, i32
  }
  func.func @transform_6(%arg0: i32, %arg1: i32) -> (i32, i32, i32) {
    %c0_i32 = arith.constant 0 : i32
    %c0_i32_0 = arith.constant 0 : i32
    return %arg0, %c0_i32, %arg1 : i32, i32, i32
  }
}

</mosaic_0001>

<llo_original>
// kernel: tpu_custom_call.1
$region0: #{tpu_custom_call.1}
  #allocation0 [shape = 'u32[]', space=smem, size = 0x4, offset = 0x4, fixed_abs, tag = 'smem constant byte address 0x4 - core index']
  #allocation1 [shape = 'u32[144,128]{1,0:T(1,128)}', space=vmem, size = 0x12000, scoped, tag = 'internal scratch']
  #allocation2 [shape = 'bf16[8,268]{1,0:T(8,128)(2,1)}', space=vmem, size = 0x1800, scoped, tag = 'scratch operand']
  #allocation3 [shape = 'bf16[8,262]{1,0:T(8,128)(2,1)}', space=vmem, size = 0x1800, scoped, tag = 'scratch operand']
  %s0 = inlined_call_operand.hbm [shape: f32[2,8,512], index: 0, kind: input, shape index: {}]
  %s1 = inlined_call_operand.hbm [shape: f32[2,2,8,12], index: 1, kind: input, shape index: {}]
  %s2 = inlined_call_operand.hbm [shape: bf16[7,8,8], index: 2, kind: input, shape index: {}]
  %s3 = inlined_call_operand.vmem [shape: f32[8,1], index: 3, kind: input, shape index: {}]
  %s4 = inlined_call_operand.vmem [shape: bf16[7,8,8], index: 4, kind: input, shape index: {}]
  %s5 = inlined_call_operand.vmem [shape: f32[8,1], index: 5, kind: input, shape index: {}]
  %s6 = inlined_call_operand.hbm [shape: f32[2,8,512], index: 6, kind: output, shape index: {}]
  %s7 = sld [smem:[#allocation0]]
  $region77: #{tpu_custom_call.1} parent=0
    _
  %s9 = ssub.s32 1, %s7
  %s10 = scalar_select 0, %s9, %s7
  $region1: #{tpu_custom_call.1} parent=0
    #allocation4 [shape = 'u8[16384]{0}', space=vmem, size = 0x4000, scoped, tag = 'input window, operand 0']
    #allocation5 [shape = 's32[2]{0}', space=sflag, size = 0x8, scoped, tag = 'scoped memory for tpu_custom_call.1']
    #allocation6 [shape = 's32[2]{0}', space=sflag, size = 0x8, scoped, tag = 'scoped memory for tpu_custom_call.1']
    #allocation7 [shape = 'u8[8192]{0}', space=vmem, size = 0x2000, scoped, tag = 'input window, operand 1']
    #allocation8 [shape = 's32[2]{0}', space=sflag, size = 0x8, scoped, tag = 'scoped memory for tpu_custom_call.1']
    #allocation9 [shape = 'u8[14336]{0}', space=vmem, size = 0x3800, scoped, tag = 'input window, operand 2, single buffered']
    #allocation10 [shape = 'u8[16384]{0}', space=vmem, size = 0x4000, scoped, tag = 'output window, operand 0']
    %11 = vsyncpa [#allocation5], 0
    %s12 = scalar_lea.sflag [#allocation5], 1
    %13 = vsyncpa %s12, 0
    %14 = vsyncpa [#allocation8], 0
    %s15 = scalar_lea.sflag [#allocation8], 1
    %16 = vsyncpa %s15, 0
    %17 = vsyncpa [#allocation6], 0
    %s18 = scalar_lea.sflag [#allocation6], 1
    %19 = vsyncpa %s18, 0
    loop: start=0, step=1, limit=6
    $region2: #{tpu_custom_call.1} parent=1 // loop_pre_header
      _
    $region3: #{tpu_custom_call.1} parent=1 // loop_header
      %s21 = sphi 0, %s25
      %p22 = scmp.ge.s32.totalorder %s21, 6
      %s28 = sphi 0, %s40
      %s29 = sphi 0, %s36
      %s30 = sphi 0, %s28
      %s31 = sphi 0, %s29
      %s32 = sphi 0, %s30
      %s33 = sphi 0, %s31
      %s45 = sphi 0, %s47
      %s48 = sphi 0, %s45
      %s49 = sphi 0, %s48
      %s65 = sphi 0, %s49
      %s73 = sphi 0, %s75
      %s76 = sphi 0, %s73
      %s77 = sphi 0, %s76
      %s93 = sphi 0, %s77
      %s97 = sphi 0, %s97
      %s99 = sphi 0, %s97
      %s100 = sphi 0, %s99
      %s114 = sphi 0, %s100
      %s118 = sphi 0, %s118
      %s120 = sphi 0, %s118
      %s121 = sphi 0, %s120
      %s135 = sphi 0, %s121
      %s139 = sphi 0, %s139
      %s141 = sphi 0, %s139
      %s142 = sphi 0, %s141
      %s156 = sphi 0, %s142
      %s160 = sphi 0, %s160
      %s162 = sphi 0, %s160
      %s163 = sphi 0, %s162
      %s177 = sphi 0, %s163
      %s185 = sphi 0, %s187
      %s188 = sphi 0, %s185
      %s189 = sphi 0, %s188
      %s205 = sphi 0, %s189
    $region4: #{tpu_custom_call.1} parent=1 // loop_header_branch
      %24 = sbr.rel (%p22) target = $region8
    $region5: #{tpu_custom_call.1} parent=1 // loop_body
      %s26 = ssub.s32 %s21, 1
      %s27 = ssub.s32 %s21, 2
      %s34 = sadd.s32 1, %s29
      %p35 = scmp.ge.s32.totalorder %s34, 2
      %s36 = scalar_select %p35, 0, %s34
      %s37 = sadd.s32 1, %s28
      %s38 = scalar_select %p35, %s37, %s28
      %p39 = scmp.ge.s32.totalorder %s38, 2
      %s40 = scalar_select %p39, 0, %s38
      %s41 = ssub.s32 %s28, %s40
      %s42 = ssub.s32 %s29, %s36
      %s43 = sor.u32 %s41, %s42
      %p44 = scmp.eq.s32.totalorder %s43, 0
      %s46 = sadd.s32 %s45, 1
      %s47 = scalar_select %p44, %s45, %s46
      %p50 = pneg %p44
      %p51 = scmp.eq.s32.totalorder %s21, 3
      %p52 = por %p50, %p51
      %p53 = scmp.ne.s32.totalorder %s45, %s48
      %p54 = scmp.eq.s32.totalorder %s21, 0
      %p55 = por %p53, %p54
      %p56 = scmp.ne.s32.totalorder %s45, %s48
      %p57 = scmp.eq.s32.totalorder %s26, 3
      %p58 = por %p56, %p57
      %p59 = scmp.ne.s32.totalorder %s48, %s49
      %p60 = scmp.eq.s32.totalorder %s26, 0
      %p61 = por %p59, %p60
      %p62 = scmp.ne.s32.totalorder %s48, %s49
      %p63 = scmp.eq.s32.totalorder %s27, 3
      %p64 = por %p62, %p63
      %p66 = scmp.ne.s32.totalorder %s49, %s65
      %p67 = scmp.eq.s32.totalorder %s27, 0
      %p68 = por %p66, %p67
      %s69 = ssub.s32 %s28, %s40
      %s70 = ssub.s32 %s29, %s36
      %s71 = sor.u32 %s69, %s70
      %p72 = scmp.eq.s32.totalorder %s71, 0
      %s74 = sadd.s32 %s73, 1
      %s75 = scalar_select %p72, %s73, %s74
      %p78 = pneg %p72
      %p79 = scmp.eq.s32.totalorder %s21, 3
      %p80 = por %p78, %p79
      %p81 = scmp.ne.s32.totalorder %s73, %s76
      %p82 = scmp.eq.s32.totalorder %s21, 0
      %p83 = por %p81, %p82
      %p84 = scmp.ne.s32.totalorder %s73, %s76
      %p85 = scmp.eq.s32.totalorder %s26, 3
      %p86 = por %p84, %p85
      %p87 = scmp.ne.s32.totalorder %s76, %s77
      %p88 = scmp.eq.s32.totalorder %s26, 0
      %p89 = por %p87, %p88
      %p90 = scmp.ne.s32.totalorder %s76, %s77
      %p91 = scmp.eq.s32.totalorder %s27, 3
      %p92 = por %p90, %p91
      %p94 = scmp.ne.s32.totalorder %s77, %s93
      %p95 = scmp.eq.s32.totalorder %s27, 0
      %p96 = por %p94, %p95
      %s98 = sadd.s32 %s97, 1
      %p101 = scmp.eq.s32.totalorder %s21, 3
      %p102 = scmp.ne.s32.totalorder %s97, %s99
      %p103 = scmp.eq.s32.totalorder %s21, 0
      %p104 = por %p102, %p103
      %p105 = scmp.ne.s32.totalorder %s97, %s99
      %p106 = scmp.eq.s32.totalorder %s26, 3
      %p107 = por %p105, %p106
      %p108 = scmp.ne.s32.totalorder %s99, %s100
      %p109 = scmp.eq.s32.totalorder %s26, 0
      %p110 = por %p108, %p109
      %p111 = scmp.ne.s32.totalorder %s99, %s100
      %p112 = scmp.eq.s32.totalorder %s27, 3
      %p113 = por %p111, %p112
      %p115 = scmp.ne.s32.totalorder %s100, %s114
      %p116 = scmp.eq.s32.totalorder %s27, 0
      %p117 = por %p115, %p116
      %s119 = sadd.s32 %s118, 1
      %p122 = scmp.eq.s32.totalorder %s21, 3
      %p123 = scmp.ne.s32.totalorder %s118, %s120
      %p124 = scmp.eq.s32.totalorder %s21, 0
      %p125 = por %p123, %p124
      %p126 = scmp.ne.s32.totalorder %s118, %s120
      %p127 = scmp.eq.s32.totalorder %s26, 3
      %p128 = por %p126, %p127
      %p129 = scmp.ne.s32.totalorder %s120, %s121
      %p130 = scmp.eq.s32.totalorder %s26, 0
      %p131 = por %p129, %p130
      %p132 = scmp.ne.s32.totalorder %s120, %s121
      %p133 = scmp.eq.s32.totalorder %s27, 3
      %p134 = por %p132, %p133
      %p136 = scmp.ne.s32.totalorder %s121, %s135
      %p137 = scmp.eq.s32.totalorder %s27, 0
      %p138 = por %p136, %p137
      %s140 = sadd.s32 %s139, 1
      %p143 = scmp.eq.s32.totalorder %s21, 3
      %p144 = scmp.ne.s32.totalorder %s139, %s141
      %p145 = scmp.eq.s32.totalorder %s21, 0
      %p146 = por %p144, %p145
      %p147 = scmp.ne.s32.totalorder %s139, %s141
      %p148 = scmp.eq.s32.totalorder %s26, 3
      %p149 = por %p147, %p148
      %p150 = scmp.ne.s32.totalorder %s141, %s142
      %p151 = scmp.eq.s32.totalorder %s26, 0
      %p152 = por %p150, %p151
      %p153 = scmp.ne.s32.totalorder %s141, %s142
      %p154 = scmp.eq.s32.totalorder %s27, 3
      %p155 = por %p153, %p154
      %p157 = scmp.ne.s32.totalorder %s142, %s156
      %p158 = scmp.eq.s32.totalorder %s27, 0
      %p159 = por %p157, %p158
      %s161 = sadd.s32 %s160, 1
      %p164 = scmp.eq.s32.totalorder %s21, 3
      %p165 = scmp.ne.s32.totalorder %s160, %s162
      %p166 = scmp.eq.s32.totalorder %s21, 0
      %p167 = por %p165, %p166
      %p168 = scmp.ne.s32.totalorder %s160, %s162
      %p169 = scmp.eq.s32.totalorder %s26, 3
      %p170 = por %p168, %p169
      %p171 = scmp.ne.s32.totalorder %s162, %s163
      %p172 = scmp.eq.s32.totalorder %s26, 0
      %p173 = por %p171, %p172
      %p174 = scmp.ne.s32.totalorder %s162, %s163
      %p175 = scmp.eq.s32.totalorder %s27, 3
      %p176 = por %p174, %p175
      %p178 = scmp.ne.s32.totalorder %s163, %s177
      %p179 = scmp.eq.s32.totalorder %s27, 0
      %p180 = por %p178, %p179
      %s181 = ssub.s32 %s28, %s40
      %s182 = ssub.s32 %s29, %s36
      %s183 = sor.u32 %s181, %s182
      %p184 = scmp.eq.s32.totalorder %s183, 0
      %s186 = sadd.s32 %s185, 1
      %s187 = scalar_select %p184, %s185, %s186
      %p190 = pneg %p184
      %p191 = scmp.eq.s32.totalorder %s21, 3
      %p192 = por %p190, %p191
      %p193 = scmp.ne.s32.totalorder %s185, %s188
      %p194 = scmp.eq.s32.totalorder %s21, 0
      %p195 = por %p193, %p194
      %p196 = scmp.ne.s32.totalorder %s185, %s188
      %p197 = scmp.eq.s32.totalorder %s26, 3
      %p198 = por %p196, %p197
      %p199 = scmp.ne.s32.totalorder %s188, %s189
      %p200 = scmp.eq.s32.totalorder %s26, 0
      %p201 = por %p199, %p200
      %p202 = scmp.ne.s32.totalorder %s188, %s189
      %p203 = scmp.eq.s32.totalorder %s27, 3
      %p204 = por %p202, %p203
      %p206 = scmp.ne.s32.totalorder %s189, %s205
      %p207 = scmp.eq.s32.totalorder %s27, 0
      %p208 = por %p206, %p207
      %p209 = scmp.le.s32.totalorder 1, %s21
      %p210 = scmp.lt.s32.totalorder %s21, 5
      %p211 = pnand %p209, %p210
      %p212 = pneg %p211
      // Predicated region
      $region9: #{tpu_custom_call.1} parent=5 // pred_check
        _
      $region10: #{tpu_custom_call.1} parent=5 // pred_check_branch
        %214 = sbr.rel (%p211) target = $region12
      $region11: #{tpu_custom_call.1} parent=5 // pred_region
        %s215 = ssub.s32 %s21, 1
        // Predicated region
        $region13: #{tpu_custom_call.1} parent=11 // pred_check
          %p216 = pneg %p110
        $region14: #{tpu_custom_call.1} parent=11 // pred_check_branch
          %218 = sbr.rel (%p216) target = $region16
        $region15: #{tpu_custom_call.1} parent=11 // pred_region
          %s220 = ssub.s32 448, 448
          %221 = vsyncadd [#allocation8], %s220
          %s222 = sshll.u32 [#allocation9], 4
          %s223 = int_to_ptr.vmem [resolvable:$true] %s222
          %228 = dma.hbm_to_vmem [thread:$0]  %s2, 448, %s223, [#allocation8], 64, 64, 4
        $region16: #{tpu_custom_call.1} parent=11 // pred_fallthru
          _
        // Predicated region
        $region17: #{tpu_custom_call.1} parent=11 // pred_check
          %p229 = pneg %p131
        $region18: #{tpu_custom_call.1} parent=11 // pred_check_branch
          %231 = sbr.rel (%p229) target = $region20
        $region19: #{tpu_custom_call.1} parent=11 // pred_region
          _
        $region20: #{tpu_custom_call.1} parent=11 // pred_fallthru
          _
        // Predicated region
        $region21: #{tpu_custom_call.1} parent=11 // pred_check
          %p232 = pneg %p152
        $region22: #{tpu_custom_call.1} parent=11 // pred_check_branch
          %234 = sbr.rel (%p232) target = $region24
        $region23: #{tpu_custom_call.1} parent=11 // pred_region
          _
        $region24: #{tpu_custom_call.1} parent=11 // pred_fallthru
          _
        // Predicated region
        $region25: #{tpu_custom_call.1} parent=11 // pred_check
          %p235 = pneg %p173
        $region26: #{tpu_custom_call.1} parent=11 // pred_check_branch
          %237 = sbr.rel (%p235) target = $region28
        $region27: #{tpu_custom_call.1} parent=11 // pred_region
          _
        $region28: #{tpu_custom_call.1} parent=11 // pred_fallthru
          _
      $region12: #{tpu_custom_call.1} parent=5 // pred_fallthru
        _
      %p238 = scmp.lt.s32.totalorder %s21, 4
      // Predicated region
      $region29: #{tpu_custom_call.1} parent=5 // pred_check
        %p239 = pneg %p238
      $region30: #{tpu_custom_call.1} parent=5 // pred_check_branch
        %241 = sbr.rel (%p239) target = $region32
      $region31: #{tpu_custom_call.1} parent=5 // pred_region
        // Predicated region
        $region33: #{tpu_custom_call.1} parent=31 // pred_check
          %p242 = pneg %p55
        $region34: #{tpu_custom_call.1} parent=31 // pred_check_branch
          %244 = sbr.rel (%p242) target = $region36
        $region35: #{tpu_custom_call.1} parent=31 // pred_region
          %s245 = sand.u32 %s45, 1
          %s246 = scalar_lea.sflag [#allocation5], %s245
          %s247 = sand.u32 %s45, 1
          %s248 = smul.addr %s247, 16
          %s249 = scalar_lea.vmem [#allocation4], %s248
          %s250 = smul.u32 2, %s29
          %s252 = ssub.s32 256, 256
          %253 = vsyncadd %s246, %s252
          %s254 = smul.addr %s28, 4
          %s255 = sadd.s32 %s250, %s254
          %s256 = smul.addr %s255, 128
          %s257 = scalar_lea.hbm %s0, %s256
          %s259 = sshll.u32 %s249, 4
          %s260 = int_to_ptr.vmem [resolvable:$true] %s259
          %262 = dma.hbm_to_vmem [thread:$0]  %s257, 256, %s260, %s246
        $region36: #{tpu_custom_call.1} parent=31 // pred_fallthru
          _
        // Predicated region
        $region37: #{tpu_custom_call.1} parent=31 // pred_check
          %p263 = pneg %p83
        $region38: #{tpu_custom_call.1} parent=31 // pred_check_branch
          %265 = sbr.rel (%p263) target = $region40
        $region39: #{tpu_custom_call.1} parent=31 // pred_region
          %s266 = sand.u32 %s21, 1
          %s267 = scalar_lea.sflag [#allocation8], %s266
          %s268 = sand.u32 %s73, 1
          %s269 = smul.addr %s268, 8
          %s270 = scalar_lea.vmem [#allocation7], %s269
          %s272 = ssub.s32 128, 128
          %273 = vsyncadd %s267, %s272
          %s274 = smul.addr %s28, 2
          %s275 = sadd.s32 %s29, %s274
          %s276 = smul.addr %s275, 128
          %s277 = scalar_lea.hbm %s1, %s276
          %s279 = sshll.u32 %s270, 4
          %s280 = int_to_ptr.vmem [resolvable:$true] %s279
          %282 = dma.hbm_to_vmem [thread:$0]  %s277, 128, %s280, %s267
        $region40: #{tpu_custom_call.1} parent=31 // pred_fallthru
          _
      $region32: #{tpu_custom_call.1} parent=5 // pred_fallthru
        _
      %p283 = scmp.le.s32.totalorder 1, %s21
      %p284 = scmp.lt.s32.totalorder %s21, 5
      %p285 = pnand %p283, %p284
      %p286 = pneg %p285
      // Predicated region
      $region41: #{tpu_custom_call.1} parent=5 // pred_check
        _
      $region42: #{tpu_custom_call.1} parent=5 // pred_check_branch
        %288 = sbr.rel (%p285) target = $region44
      $region43: #{tpu_custom_call.1} parent=5 // pred_region
        %s289 = ssub.s32 %s21, 1
        %s290 = sand.u32 %s48, 1
        %s291 = scalar_lea.sflag [#allocation5], %s290
        %s292 = sand.u32 %s48, 1
        %s293 = smul.addr %s292, 16
        %s294 = scalar_lea.vmem [#allocation4], %s293
        // Predicated region
        $region45: #{tpu_custom_call.1} parent=43 // pred_check
          %p295 = pneg %p61
        $region46: #{tpu_custom_call.1} parent=43 // pred_check_branch
          %297 = sbr.rel (%p295) target = $region48
        $region47: #{tpu_custom_call.1} parent=43 // pred_region
          %298 = dma.done %s291, 256
        $region48: #{tpu_custom_call.1} parent=43 // pred_fallthru
          _
        %s299 = sand.u32 %s26, 1
        %s300 = scalar_lea.sflag [#allocation8], %s299
        %s301 = sand.u32 %s76, 1
        %s302 = smul.addr %s301, 8
        %s303 = scalar_lea.vmem [#allocation7], %s302
        // Predicated region
        $region49: #{tpu_custom_call.1} parent=43 // pred_check
          %p304 = pneg %p89
        $region50: #{tpu_custom_call.1} parent=43 // pred_check_branch
          %306 = sbr.rel (%p304) target = $region52
        $region51: #{tpu_custom_call.1} parent=43 // pred_region
          %307 = dma.done %s300, 128
        $region52: #{tpu_custom_call.1} parent=43 // pred_fallthru
          _
        // Predicated region
        $region53: #{tpu_custom_call.1} parent=43 // pred_check
          %p308 = pneg %p110
        $region54: #{tpu_custom_call.1} parent=43 // pred_check_branch
          %310 = sbr.rel (%p308) target = $region56
        $region55: #{tpu_custom_call.1} parent=43 // pred_region
          %311 = dma.done [#allocation8], 448
        $region56: #{tpu_custom_call.1} parent=43 // pred_fallthru
          _
        %s312 = sand.u32 %s48, 1
        %s313 = scalar_lea.sflag [#allocation5], %s312
        %s314 = sand.u32 %s48, 1
        %s315 = smul.addr %s314, 16
        %s316 = scalar_lea.vmem [#allocation4], %s315
        %p317 = pneg %p61
        %p318 = pneg %p58
        %s319 = sand.u32 %s26, 1
        %s320 = scalar_lea.sflag [#allocation8], %s319
        %s321 = sand.u32 %s76, 1
        %s322 = smul.addr %s321, 8
        %s323 = scalar_lea.vmem [#allocation7], %s322
        %p324 = pneg %p89
        %p325 = pneg %p86
        %p326 = pneg %p110
        %p327 = pneg %p107
        %p328 = pneg %p131
        %p329 = pneg %p128
        %p330 = pneg %p152
        %p331 = pneg %p149
        %p332 = pneg %p173
        %p333 = pneg %p170
        %p334 = pneg %p201
        %p335 = pneg %p198
        %s336 = sand.u32 %s188, 1
        %s337 = scalar_lea.sflag [#allocation6], %s336
        %s338 = sand.u32 %s188, 1
        %s339 = smul.addr %s338, 16
        %s340 = scalar_lea.vmem [#allocation10], %s339
        %s341 = smul.u32 2, %s31
        %s342 = smul.u32 2, %s31
        %v344 = vld [vmem:[%s303] sm:$0xff]
        %v345 = vpack.c.bf16 %v344, %v344
        %vm346 = vcmask 44032
        %347 = vst.msk [vmem:[#allocation2] sm:$0xf] %vm346, %v345
        %v348 = vld [vmem:[%s294] sm:$0xff]
        %v349 = vld [vmem:[%s294 + $0x8] sm:$0xff]
        %v350 = vpack.c.bf16 %v348, %v348
        %v351 = vpack.c.bf16 %v349, %v349
        %v354 = vunpack.c.l.b16 %v350
        %v355 = vunpack.c.l.b16 %v351
        %v356 = vpack.c.b16 %v355, %v354
        %357 = vrot.lane.b32.xlu0 %v356, 6
        %v358 = vpop.permute.xlu0 %357
        %v359 = vrot.slane %v358, 4
        %vm360 = vcmask 48128
        %v361 = vsel %vm360, %v359, %v358
        %vm364 = vcmask 1043504
        %vm365 = vcmask 1047556
        %vm366 = vmor %vm365, %vm364
        %367 = vst.msk [vmem:[#allocation2] sm:$0xff] %vm366, %v361
        %368 = vst.msk [vmem:[#allocation2 + $0x8] sm:$0xf] %vm346, %v359
        %v369 = vld [vmem:[%s303] sm:$0xff]
        %v370 = vpack.c.bf16 %v369, %v369
        %vm371 = vcmask 93232
        %372 = vst.msk [vmem:[#allocation2 + $0x8] sm:$0xf] %vm371, %v370
        %v373 = vld [vmem:[#allocation9] sm:$0xf]
        %v374 = vld [vmem:[#allocation2] sm:$0xff]
        %v375 = vld [vmem:[#allocation2 + $0x8] sm:$0xf]
        %s376 = scalar_lea.vmem [#allocation9], 4
        %v377 = vld [vmem:[%s376] sm:$0xf]
        %v380 = vunpack.c.l.b16 %v374
        %v381 = vunpack.c.h.b16 %v374
        %v382 = vunpack.c.l.b16 %v375
        %v383 = vpack.c.b16 %v380, %v380
        %v384 = vpack.c.b16 %v381, %v381
        %v385 = vpack.c.b16 %v382, %v382
        %386 = vrot.lane.b32.xlu0 %v383, 127
        %v387 = vpop.permute.xlu0 %386
        %388 = vrot.lane.b32.xlu0 %v384, 127
        %v389 = vpop.permute.xlu0 %388
        %390 = vrot.lane.b32.xlu0 %v385, 127
        %v391 = vpop.permute.xlu0 %390
        %vm392 = vcmask 1039360
        %v393 = vsel %vm392, %v387, %v389
        %v394 = vsel %vm392, %v389, %v391
        %vm395 = vcmask 64512
        %v397 = vsel %vm395, %v377, 0
        %vm399 = vcmask 1043456
        %v401 = vsel %vm399, %v393, 0
        %v404 = vsel %vm399, %v394, 0
        %v407 = vsel %vm399, %v391, 0
        %409 = vmatprep.subr.bf16.mxu0 %v404
        %410 = vmatpush1.bf16.msra.mxu0 %v401
        %411 = vmatprep.subr.bf16.mxu0 0
        %412 = vmatpush1.bf16.msra.mxu0 0
        %413 = vmatprep.subr.bf16.mxu0 0
        %414 = vmatpush1.bf16.msra.mxu0 0
        %415 = vmatprep.subr.bf16.mxu0 0
        %416 = vmatpush1.bf16.msra.mxu0 0
        %417 = vmatprep.subr.bf16.mxu0 0
        %418 = vmatpush1.bf16.msra.mxu0 0
        %419 = vmatprep.subr.bf16.mxu0 0
        %420 = vmatpush1.bf16.msra.mxu0 0
        %421 = vmatprep.subr.bf16.mxu0 0
        %422 = vmatpush1.bf16.msra.mxu0 0
        %423 = vmatprep.subr.bf16.mxu0 0
        %424 = vmatpush1.bf16.msra.mxu0 0
        %425 = vmatprep.subr.bf16.mxu0 0
        %426 = vmatpush1.bf16.msra.mxu0 0
        %427 = vmatprep.subr.bf16.mxu0 0
        %428 = vmatpush1.bf16.msra.mxu0 0
        %429 = vmatprep.subr.bf16.mxu0 0
        %430 = vmatpush1.bf16.msra.mxu0 0
        %431 = vmatprep.subr.bf16.mxu0 0
        %432 = vmatpush1.bf16.msra.mxu0 0
        %433 = vmatprep.subr.bf16.mxu0 0
        %434 = vmatpush1.bf16.msra.mxu0 0
        %435 = vmatprep.subr.bf16.mxu0 0
        %436 = vmatpush1.bf16.msra.mxu0 0
        %437 = vmatprep.subr.bf16.mxu0 0
        %438 = vmatpush1.bf16.msra.mxu0 0
        %439 = vmatprep.subr.bf16.mxu0 0
        %440 = vmatpush1.bf16.msra.mxu0 0
        %441 = vmatprep.mubr.bf16.mxu0 0
        %442 = vmatmul.mubr.bf16.gmra.mrb[0].mxu0 %v397
        %v443 = vpop.f32.mrb[0].mxu0
        %v444 = vadd.f32 0.0, %v443
        %v445 = vpop.f32.mrb[0].mxu0
        %v446 = vadd.f32 0.0, %v445
        %v447 = vpop.f32.mrb[0].mxu0
        %v448 = vpop.f32.mrb[0].mxu0
        %449 = vdwg.mxu0
        %450 = vmatprep.subr.bf16.mxu0 0
        %451 = vmatpush1.bf16.msra.mxu0 %v407
        %452 = vmatprep.subr.bf16.mxu0 0
        %453 = vmatpush1.bf16.msra.mxu0 0
        %454 = vmatprep.subr.bf16.mxu0 0
        %455 = vmatpush1.bf16.msra.mxu0 0
        %456 = vmatprep.subr.bf16.mxu0 0
        %457 = vmatpush1.bf16.msra.mxu0 0
        %458 = vmatprep.subr.bf16.mxu0 0
        %459 = vmatpush1.bf16.msra.mxu0 0
        %460 = vmatprep.subr.bf16.mxu0 0
        %461 = vmatpush1.bf16.msra.mxu0 0
        %462 = vmatprep.subr.bf16.mxu0 0
        %463 = vmatpush1.bf16.msra.mxu0 0
        %464 = vmatprep.subr.bf16.mxu0 0
        %465 = vmatpush1.bf16.msra.mxu0 0
        %466 = vmatprep.subr.bf16.mxu0 0
        %467 = vmatpush1.bf16.msra.mxu0 0
        %468 = vmatprep.subr.bf16.mxu0 0
        %469 = vmatpush1.bf16.msra.mxu0 0
        %470 = vmatprep.subr.bf16.mxu0 0
        %471 = vmatpush1.bf16.msra.mxu0 0
        %472 = vmatprep.subr.bf16.mxu0 0
        %473 = vmatpush1.bf16.msra.mxu0 0
        %474 = vmatprep.subr.bf16.mxu0 0
        %475 = vmatpush1.bf16.msra.mxu0 0
        %476 = vmatprep.subr.bf16.mxu0 0
        %477 = vmatpush1.bf16.msra.mxu0 0
        %478 = vmatprep.subr.bf16.mxu0 0
        %479 = vmatpush1.bf16.msra.mxu0 0
        %480 = vmatprep.subr.bf16.mxu0 0
        %481 = vmatpush1.bf16.msra.mxu0 0
        %482 = vmatprep.mubr.bf16.mxu0 0
        %483 = vmatmul.mubr.bf16.gmra.mrb[0].mxu0 %v397
        %v484 = vpop.f32.mrb[0].mxu0
        %v485 = vadd.f32 0.0, %v484
        %v486 = vpop.f32.mrb[0].mxu0
        %v487 = vpop.f32.mrb[0].mxu0
        %v488 = vpop.f32.mrb[0].mxu0
        %489 = vdwg.mxu0
        %v491 = vsel %vm395, %v373, 0
        %v494 = vsel %vm399, %v383, 0
        %v497 = vsel %vm399, %v384, 0
        %v500 = vsel %vm399, %v385, 0
        %502 = vmatprep.subr.bf16.mxu0 %v497
        %503 = vmatpush1.bf16.msra.mxu0 %v494
        %504 = vmatprep.subr.bf16.mxu0 0
        %505 = vmatpush1.bf16.msra.mxu0 0
        %506 = vmatprep.subr.bf16.mxu0 0
        %507 = vmatpush1.bf16.msra.mxu0 0
        %508 = vmatprep.subr.bf16.mxu0 0
        %509 = vmatpush1.bf16.msra.mxu0 0
        %510 = vmatprep.subr.bf16.mxu0 0
        %511 = vmatpush1.bf16.msra.mxu0 0
        %512 = vmatprep.subr.bf16.mxu0 0
        %513 = vmatpush1.bf16.msra.mxu0 0
        %514 = vmatprep.subr.bf16.mxu0 0
        %515 = vmatpush1.bf16.msra.mxu0 0
        %516 = vmatprep.subr.bf16.mxu0 0
        %517 = vmatpush1.bf16.msra.mxu0 0
        %518 = vmatprep.subr.bf16.mxu0 0
        %519 = vmatpush1.bf16.msra.mxu0 0
        %520 = vmatprep.subr.bf16.mxu0 0
        %521 = vmatpush1.bf16.msra.mxu0 0
        %522 = vmatprep.subr.bf16.mxu0 0
        %523 = vmatpush1.bf16.msra.mxu0 0
        %524 = vmatprep.subr.bf16.mxu0 0
        %525 = vmatpush1.bf16.msra.mxu0 0
        %526 = vmatprep.subr.bf16.mxu0 0
        %527 = vmatpush1.bf16.msra.mxu0 0
        %528 = vmatprep.subr.bf16.mxu0 0
        %529 = vmatpush1.bf16.msra.mxu0 0
        %530 = vmatprep.subr.bf16.mxu0 0
        %531 = vmatpush1.bf16.msra.mxu0 0
        %532 = vmatprep.subr.bf16.mxu0 0
        %533 = vmatpush1.bf16.msra.mxu0 0
        %534 = vmatprep.mubr.bf16.mxu0 0
        %535 = vmatmul.mubr.bf16.gmra.mrb[0].mxu0 %v491
        %v536 = vpop.f32.mrb[0].mxu0
        %v537 = vadd.f32 %v444, %v536
        %v538 = vpop.f32.mrb[0].mxu0
        %v539 = vadd.f32 %v446, %v538
        %v540 = vpop.f32.mrb[0].mxu0
        %v541 = vpop.f32.mrb[0].mxu0
        %542 = vdwg.mxu0
        %543 = vmatprep.subr.bf16.mxu0 0
        %544 = vmatpush1.bf16.msra.mxu0 %v500
        %545 = vmatprep.subr.bf16.mxu0 0
        %546 = vmatpush1.bf16.msra.mxu0 0
        %547 = vmatprep.subr.bf16.mxu0 0
        %548 = vmatpush1.bf16.msra.mxu0 0
        %549 = vmatprep.subr.bf16.mxu0 0
        %550 = vmatpush1.bf16.msra.mxu0 0
        %551 = vmatprep.subr.bf16.mxu0 0
        %552 = vmatpush1.bf16.msra.mxu0 0
        %553 = vmatprep.subr.bf16.mxu0 0
        %554 = vmatpush1.bf16.msra.mxu0 0
        %555 = vmatprep.subr.bf16.mxu0 0
        %556 = vmatpush1.bf16.msra.mxu0 0
        %557 = vmatprep.subr.bf16.mxu0 0
        %558 = vmatpush1.bf16.msra.mxu0 0
        %559 = vmatprep.subr.bf16.mxu0 0
        %560 = vmatpush1.bf16.msra.mxu0 0
        %561 = vmatprep.subr.bf16.mxu0 0
        %562 = vmatpush1.bf16.msra.mxu0 0
        %563 = vmatprep.subr.bf16.mxu0 0
        %564 = vmatpush1.bf16.msra.mxu0 0
        %565 = vmatprep.subr.bf16.mxu0 0
        %566 = vmatpush1.bf16.msra.mxu0 0
        %567 = vmatprep.subr.bf16.mxu0 0
        %568 = vmatpush1.bf16.msra.mxu0 0
        %569 = vmatprep.subr.bf16.mxu0 0
        %570 = vmatpush1.bf16.msra.mxu0 0
        %571 = vmatprep.subr.bf16.mxu0 0
        %572 = vmatpush1.bf16.msra.mxu0 0
        %573 = vmatprep.subr.bf16.mxu0 0
        %574 = vmatpush1.bf16.msra.mxu0 0
        %575 = vmatprep.mubr.bf16.mxu0 0
        %576 = vmatmul.mubr.bf16.gmra.mrb[0].mxu0 %v491
        %v577 = vpop.f32.mrb[0].mxu0
        %v578 = vadd.f32 %v485, %v577
        %v579 = vpop.f32.mrb[0].mxu0
        %v580 = vpop.f32.mrb[0].mxu0
        %v581 = vpop.f32.mrb[0].mxu0
        %582 = vdwg.mxu0
        %s583 = scalar_lea.vmem [#allocation9], 8
        %v584 = vld [vmem:[%s583] sm:$0xf]
        %585 = vrot.lane.b32.xlu0 %v383, 126
        %v586 = vpop.permute.xlu0 %585
        %587 = vrot.lane.b32.xlu0 %v384, 126
        %v588 = vpop.permute.xlu0 %587
        %589 = vrot.lane.b32.xlu0 %v385, 126
        %v590 = vpop.permute.xlu0 %589
        %vm591 = vcmask 1031168
        %v592 = vsel %vm591, %v586, %v588
        %v593 = vsel %vm591, %v588, %v590
        %v595 = vsel %vm395, %v584, 0
        %v598 = vsel %vm399, %v592, 0
        %v601 = vsel %vm399, %v593, 0
        %v604 = vsel %vm399, %v590, 0
        %606 = vmatprep.subr.bf16.mxu0 %v601
        %607 = vmatpush1.bf16.msra.mxu0 %v598
        %608 = vmatprep.subr.bf16.mxu0 0
        %609 = vmatpush1.bf16.msra.mxu0 0
        %610 = vmatprep.subr.bf16.mxu0 0
        %611 = vmatpush1.bf16.msra.mxu0 0
        %612 = vmatprep.subr.bf16.mxu0 0
        %613 = vmatpush1.bf16.msra.mxu0 0
        %614 = vmatprep.subr.bf16.mxu0 0
        %615 = vmatpush1.bf16.msra.mxu0 0
        %616 = vmatprep.subr.bf16.mxu0 0
        %617 = vmatpush1.bf16.msra.mxu0 0
        %618 = vmatprep.subr.bf16.mxu0 0
        %619 = vmatpush1.bf16.msra.mxu0 0
        %620 = vmatprep.subr.bf16.mxu0 0
        %621 = vmatpush1.bf16.msra.mxu0 0
        %622 = vmatprep.subr.bf16.mxu0 0
        %623 = vmatpush1.bf16.msra.mxu0 0
        %624 = vmatprep.subr.bf16.mxu0 0
        %625 = vmatpush1.bf16.msra.mxu0 0
        %626 = vmatprep.subr.bf16.mxu0 0
        %627 = vmatpush1.bf16.msra.mxu0 0
        %628 = vmatprep.subr.bf16.mxu0 0
        %629 = vmatpush1.bf16.msra.mxu0 0
        %630 = vmatprep.subr.bf16.mxu0 0
        %631 = vmatpush1.bf16.msra.mxu0 0
        %632 = vmatprep.subr.bf16.mxu0 0
        %633 = vmatpush1.bf16.msra.mxu0 0
        %634 = vmatprep.subr.bf16.mxu0 0
        %635 = vmatpush1.bf16.msra.mxu0 0
        %636 = vmatprep.subr.bf16.mxu0 0
        %637 = vmatpush1.bf16.msra.mxu0 0
        %638 = vmatprep.mubr.bf16.mxu0 0
        %639 = vmatmul.mubr.bf16.gmra.mrb[0].mxu0 %v595
        %v640 = vpop.f32.mrb[0].mxu0
        %v641 = vadd.f32 0.0, %v640
        %v642 = vpop.f32.mrb[0].mxu0
        %v643 = vadd.f32 0.0, %v642
        %v644 = vpop.f32.mrb[0].mxu0
        %v645 = vpop.f32.mrb[0].mxu0
        %646 = vdwg.mxu0
        %647 = vmatprep.subr.bf16.mxu0 0
        %648 = vmatpush1.bf16.msra.mxu0 %v604
        %649 = vmatprep.subr.bf16.mxu0 0
        %650 = vmatpush1.bf16.msra.mxu0 0
        %651 = vmatprep.subr.bf16.mxu0 0
        %652 = vmatpush1.bf16.msra.mxu0 0
        %653 = vmatprep.subr.bf16.mxu0 0
        %654 = vmatpush1.bf16.msra.mxu0 0
        %655 = vmatprep.subr.bf16.mxu0 0
        %656 = vmatpush1.bf16.msra.mxu0 0
        %657 = vmatprep.subr.bf16.mxu0 0
        %658 = vmatpush1.bf16.msra.mxu0 0
        %659 = vmatprep.subr.bf16.mxu0 0
        %660 = vmatpush1.bf16.msra.mxu0 0
        %661 = vmatprep.subr.bf16.mxu0 0
        %662 = vmatpush1.bf16.msra.mxu0 0
        %663 = vmatprep.subr.bf16.mxu0 0
        %664 = vmatpush1.bf16.msra.mxu0 0
        %665 = vmatprep.subr.bf16.mxu0 0
        %666 = vmatpush1.bf16.msra.mxu0 0
        %667 = vmatprep.subr.bf16.mxu0 0
        %668 = vmatpush1.bf16.msra.mxu0 0
        %669 = vmatprep.subr.bf16.mxu0 0
        %670 = vmatpush1.bf16.msra.mxu0 0
        %671 = vmatprep.subr.bf16.mxu0 0
        %672 = vmatpush1.bf16.msra.mxu0 0
        %673 = vmatprep.subr.bf16.mxu0 0
        %674 = vmatpush1.bf16.msra.mxu0 0
        %675 = vmatprep.subr.bf16.mxu0 0
        %676 = vmatpush1.bf16.msra.mxu0 0
        %677 = vmatprep.subr.bf16.mxu0 0
        %678 = vmatpush1.bf16.msra.mxu0 0
        %679 = vmatprep.mubr.bf16.mxu0 0
        %680 = vmatmul.mubr.bf16.gmra.mrb[0].mxu0 %v595
        %v681 = vpop.f32.mrb[0].mxu0
        %v682 = vadd.f32 0.0, %v681
        %v683 = vpop.f32.mrb[0].mxu0
        %v684 = vpop.f32.mrb[0].mxu0
        %v685 = vpop.f32.mrb[0].mxu0
        %686 = vdwg.mxu0
        %v687 = vadd.f32 %v537, %v641
        %v688 = vadd.f32 %v539, %v643
        %v689 = vadd.f32 %v578, %v682
        %s690 = scalar_lea.vmem [#allocation9], 12
        %v691 = vld [vmem:[%s690] sm:$0xf]
        %692 = vrot.lane.b32.xlu0 %v383, 125
        %v693 = vpop.permute.xlu0 %692
        %694 = vrot.lane.b32.xlu0 %v384, 125
        %v695 = vpop.permute.xlu0 %694
        %696 = vrot.lane.b32.xlu0 %v385, 125
        %v697 = vpop.permute.xlu0 %696
        %vm698 = vcmask 1022976
        %v699 = vsel %vm698, %v693, %v695
        %v700 = vsel %vm698, %v695, %v697
        %v702 = vsel %vm395, %v691, 0
        %v705 = vsel %vm399, %v699, 0
        %v708 = vsel %vm399, %v700, 0
        %v711 = vsel %vm399, %v697, 0
        %713 = vmatprep.subr.bf16.mxu0 %v708
        %714 = vmatpush1.bf16.msra.mxu0 %v705
        %715 = vmatprep.subr.bf16.mxu0 0
        %716 = vmatpush1.bf16.msra.mxu0 0
        %717 = vmatprep.subr.bf16.mxu0 0
        %718 = vmatpush1.bf16.msra.mxu0 0
        %719 = vmatprep.subr.bf16.mxu0 0
        %720 = vmatpush1.bf16.msra.mxu0 0
        %721 = vmatprep.subr.bf16.mxu0 0
        %722 = vmatpush1.bf16.msra.mxu0 0
        %723 = vmatprep.subr.bf16.mxu0 0
        %724 = vmatpush1.bf16.msra.mxu0 0
        %725 = vmatprep.subr.bf16.mxu0 0
        %726 = vmatpush1.bf16.msra.mxu0 0
        %727 = vmatprep.subr.bf16.mxu0 0
        %728 = vmatpush1.bf16.msra.mxu0 0
        %729 = vmatprep.subr.bf16.mxu0 0
        %730 = vmatpush1.bf16.msra.mxu0 0
        %731 = vmatprep.subr.bf16.mxu0 0
        %732 = vmatpush1.bf16.msra.mxu0 0
        %733 = vmatprep.subr.bf16.mxu0 0
        %734 = vmatpush1.bf16.msra.mxu0 0
        %735 = vmatprep.subr.bf16.mxu0 0
        %736 = vmatpush1.bf16.msra.mxu0 0
        %737 = vmatprep.subr.bf16.mxu0 0
        %738 = vmatpush1.bf16.msra.mxu0 0
        %739 = vmatprep.subr.bf16.mxu0 0
        %740 = vmatpush1.bf16.msra.mxu0 0
        %741 = vmatprep.subr.bf16.mxu0 0
        %742 = vmatpush1.bf16.msra.mxu0 0
        %743 = vmatprep.subr.bf16.mxu0 0
        %744 = vmatpush1.bf16.msra.mxu0 0
        %745 = vmatprep.mubr.bf16.mxu0 0
        %746 = vmatmul.mubr.bf16.gmra.mrb[0].mxu0 %v702
        %v747 = vpop.f32.mrb[0].mxu0
        %v748 = vadd.f32 0.0, %v747
        %v749 = vpop.f32.mrb[0].mxu0
        %v750 = vadd.f32 0.0, %v749
        %v751 = vpop.f32.mrb[0].mxu0
        %v752 = vpop.f32.mrb[0].mxu0
        %753 = vdwg.mxu0
        %754 = vmatprep.subr.bf16.mxu0 0
        %755 = vmatpush1.bf16.msra.mxu0 %v711
        %756 = vmatprep.subr.bf16.mxu0 0
        %757 = vmatpush1.bf16.msra.mxu0 0
        %758 = vmatprep.subr.bf16.mxu0 0
        %759 = vmatpush1.bf16.msra.mxu0 0
        %760 = vmatprep.subr.bf16.mxu0 0
        %761 = vmatpush1.bf16.msra.mxu0 0
        %762 = vmatprep.subr.bf16.mxu0 0
        %763 = vmatpush1.bf16.msra.mxu0 0
        %764 = vmatprep.subr.bf16.mxu0 0
        %765 = vmatpush1.bf16.msra.mxu0 0
        %766 = vmatprep.subr.bf16.mxu0 0
        %767 = vmatpush1.bf16.msra.mxu0 0
        %768 = vmatprep.subr.bf16.mxu0 0
        %769 = vmatpush1.bf16.msra.mxu0 0
        %770 = vmatprep.subr.bf16.mxu0 0
        %771 = vmatpush1.bf16.msra.mxu0 0
        %772 = vmatprep.subr.bf16.mxu0 0
        %773 = vmatpush1.bf16.msra.mxu0 0
        %774 = vmatprep.subr.bf16.mxu0 0
        %775 = vmatpush1.bf16.msra.mxu0 0
        %776 = vmatprep.subr.bf16.mxu0 0
        %777 = vmatpush1.bf16.msra.mxu0 0
        %778 = vmatprep.subr.bf16.mxu0 0
        %779 = vmatpush1.bf16.msra.mxu0 0
        %780 = vmatprep.subr.bf16.mxu0 0
        %781 = vmatpush1.bf16.msra.mxu0 0
        %782 = vmatprep.subr.bf16.mxu0 0
        %783 = vmatpush1.bf16.msra.mxu0 0
        %784 = vmatprep.subr.bf16.mxu0 0
        %785 = vmatpush1.bf16.msra.mxu0 0
        %786 = vmatprep.mubr.bf16.mxu0 0
        %787 = vmatmul.mubr.bf16.gmra.mrb[0].mxu0 %v702
        %v788 = vpop.f32.mrb[0].mxu0
        %v789 = vadd.f32 0.0, %v788
        %v790 = vpop.f32.mrb[0].mxu0
        %v791 = vpop.f32.mrb[0].mxu0
        %v792 = vpop.f32.mrb[0].mxu0
        %793 = vdwg.mxu0
        %v794 = vadd.f32 %v687, %v748
        %v795 = vadd.f32 %v688, %v750
        %v796 = vadd.f32 %v689, %v789
        %s797 = scalar_lea.vmem [#allocation9], 16
        %v798 = vld [vmem:[%s797] sm:$0xf]
        %799 = vrot.lane.b32.xlu0 %v383, 124
        %v800 = vpop.permute.xlu0 %799
        %801 = vrot.lane.b32.xlu0 %v384, 124
        %v802 = vpop.permute.xlu0 %801
        %803 = vrot.lane.b32.xlu0 %v385, 124
        %v804 = vpop.permute.xlu0 %803
        %vm805 = vcmask 1014784
        %v806 = vsel %vm805, %v800, %v802
        %v807 = vsel %vm805, %v802, %v804
        %v809 = vsel %vm395, %v798, 0
        %v812 = vsel %vm399, %v806, 0
        %v815 = vsel %vm399, %v807, 0
        %v818 = vsel %vm399, %v804, 0
        %820 = vmatprep.subr.bf16.mxu0 %v815
        %821 = vmatpush1.bf16.msra.mxu0 %v812
        %822 = vmatprep.subr.bf16.mxu0 0
        %823 = vmatpush1.bf16.msra.mxu0 0
        %824 = vmatprep.subr.bf16.mxu0 0
        %825 = vmatpush1.bf16.msra.mxu0 0
        %826 = vmatprep.subr.bf16.mxu0 0
        %827 = vmatpush1.bf16.msra.mxu0 0
        %828 = vmatprep.subr.bf16.mxu0 0
        %829 = vmatpush1.bf16.msra.mxu0 0
        %830 = vmatprep.subr.bf16.mxu0 0
        %831 = vmatpush1.bf16.msra.mxu0 0
        %832 = vmatprep.subr.bf16.mxu0 0
        %833 = vmatpush1.bf16.msra.mxu0 0
        %834 = vmatprep.subr.bf16.mxu0 0
        %835 = vmatpush1.bf16.msra.mxu0 0
        %836 = vmatprep.subr.bf16.mxu0 0
        %837 = vmatpush1.bf16.msra.mxu0 0
        %838 = vmatprep.subr.bf16.mxu0 0
        %839 = vmatpush1.bf16.msra.mxu0 0
        %840 = vmatprep.subr.bf16.mxu0 0
        %841 = vmatpush1.bf16.msra.mxu0 0
        %842 = vmatprep.subr.bf16.mxu0 0
        %843 = vmatpush1.bf16.msra.mxu0 0
        %844 = vmatprep.subr.bf16.mxu0 0
        %845 = vmatpush1.bf16.msra.mxu0 0
        %846 = vmatprep.subr.bf16.mxu0 0
        %847 = vmatpush1.bf16.msra.mxu0 0
        %848 = vmatprep.subr.bf16.mxu0 0
        %849 = vmatpush1.bf16.msra.mxu0 0
        %850 = vmatprep.subr.bf16.mxu0 0
        %851 = vmatpush1.bf16.msra.mxu0 0
        %852 = vmatprep.mubr.bf16.mxu0 0
        %853 = vmatmul.mubr.bf16.gmra.mrb[0].mxu0 %v809
        %v854 = vpop.f32.mrb[0].mxu0
        %v855 = vadd.f32 0.0, %v854
        %v856 = vpop.f32.mrb[0].mxu0
        %v857 = vadd.f32 0.0, %v856
        %v858 = vpop.f32.mrb[0].mxu0
        %v859 = vpop.f32.mrb[0].mxu0
        %860 = vdwg.mxu0
        %861 = vmatprep.subr.bf16.mxu0 0
        %862 = vmatpush1.bf16.msra.mxu0 %v818
        %863 = vmatprep.subr.bf16.mxu0 0
        %864 = vmatpush1.bf16.msra.mxu0 0
        %865 = vmatprep.subr.bf16.mxu0 0
        %866 = vmatpush1.bf16.msra.mxu0 0
        %867 = vmatprep.subr.bf16.mxu0 0
        %868 = vmatpush1.bf16.msra.mxu0 0
        %869 = vmatprep.subr.bf16.mxu0 0
        %870 = vmatpush1.bf16.msra.mxu0 0
        %871 = vmatprep.subr.bf16.mxu0 0
        %872 = vmatpush1.bf16.msra.mxu0 0
        %873 = vmatprep.subr.bf16.mxu0 0
        %874 = vmatpush1.bf16.msra.mxu0 0
        %875 = vmatprep.subr.bf16.mxu0 0
        %876 = vmatpush1.bf16.msra.mxu0 0
        %877 = vmatprep.subr.bf16.mxu0 0
        %878 = vmatpush1.bf16.msra.mxu0 0
        %879 = vmatprep.subr.bf16.mxu0 0
        %880 = vmatpush1.bf16.msra.mxu0 0
        %881 = vmatprep.subr.bf16.mxu0 0
        %882 = vmatpush1.bf16.msra.mxu0 0
        %883 = vmatprep.subr.bf16.mxu0 0
        %884 = vmatpush1.bf16.msra.mxu0 0
        %885 = vmatprep.subr.bf16.mxu0 0
        %886 = vmatpush1.bf16.msra.mxu0 0
        %887 = vmatprep.subr.bf16.mxu0 0
        %888 = vmatpush1.bf16.msra.mxu0 0
        %889 = vmatprep.subr.bf16.mxu0 0
        %890 = vmatpush1.bf16.msra.mxu0 0
        %891 = vmatprep.subr.bf16.mxu0 0
        %892 = vmatpush1.bf16.msra.mxu0 0
        %893 = vmatprep.mubr.bf16.mxu0 0
        %894 = vmatmul.mubr.bf16.gmra.mrb[0].mxu0 %v809
        %v895 = vpop.f32.mrb[0].mxu0
        %v896 = vadd.f32 0.0, %v895
        %v897 = vpop.f32.mrb[0].mxu0
        %v898 = vpop.f32.mrb[0].mxu0
        %v899 = vpop.f32.mrb[0].mxu0
        %900 = vdwg.mxu0
        %v901 = vadd.f32 %v794, %v855
        %v902 = vadd.f32 %v795, %v857
        %v903 = vadd.f32 %v796, %v896
        %s904 = scalar_lea.vmem [#allocation9], 20
        %v905 = vld [vmem:[%s904] sm:$0xf]
        %906 = vrot.lane.b32.xlu0 %v383, 123
        %v907 = vpop.permute.xlu0 %906
        %908 = vrot.lane.b32.xlu0 %v384, 123
        %v909 = vpop.permute.xlu0 %908
        %910 = vrot.lane.b32.xlu0 %v385, 123
        %v911 = vpop.permute.xlu0 %910
        %vm912 = vcmask 1006592
        %v913 = vsel %vm912, %v907, %v909
        %v914 = vsel %vm912, %v909, %v911
        %v916 = vsel %vm395, %v905, 0
        %v919 = vsel %vm399, %v913, 0
        %v922 = vsel %vm399, %v914, 0
        %v925 = vsel %vm399, %v911, 0
        %927 = vmatprep.subr.bf16.mxu0 %v922
        %928 = vmatpush1.bf16.msra.mxu0 %v919
        %929 = vmatprep.subr.bf16.mxu0 0
        %930 = vmatpush1.bf16.msra.mxu0 0
        %931 = vmatprep.subr.bf16.mxu0 0
        %932 = vmatpush1.bf16.msra.mxu0 0
        %933 = vmatprep.subr.bf16.mxu0 0
        %934 = vmatpush1.bf16.msra.mxu0 0
        %935 = vmatprep.subr.bf16.mxu0 0
        %936 = vmatpush1.bf16.msra.mxu0 0
        %937 = vmatprep.subr.bf16.mxu0 0
        %938 = vmatpush1.bf16.msra.mxu0 0
        %939 = vmatprep.subr.bf16.mxu0 0
        %940 = vmatpush1.bf16.msra.mxu0 0
        %941 = vmatprep.subr.bf16.mxu0 0
        %942 = vmatpush1.bf16.msra.mxu0 0
        %943 = vmatprep.subr.bf16.mxu0 0
        %944 = vmatpush1.bf16.msra.mxu0 0
        %945 = vmatprep.subr.bf16.mxu0 0
        %946 = vmatpush1.bf16.msra.mxu0 0
        %947 = vmatprep.subr.bf16.mxu0 0
        %948 = vmatpush1.bf16.msra.mxu0 0
        %949 = vmatprep.subr.bf16.mxu0 0
        %950 = vmatpush1.bf16.msra.mxu0 0
        %951 = vmatprep.subr.bf16.mxu0 0
        %952 = vmatpush1.bf16.msra.mxu0 0
        %953 = vmatprep.subr.bf16.mxu0 0
        %954 = vmatpush1.bf16.msra.mxu0 0
        %955 = vmatprep.subr.bf16.mxu0 0
        %956 = vmatpush1.bf16.msra.mxu0 0
        %957 = vmatprep.subr.bf16.mxu0 0
        %958 = vmatpush1.bf16.msra.mxu0 0
        %959 = vmatprep.mubr.bf16.mxu0 0
        %960 = vmatmul.mubr.bf16.gmra.mrb[0].mxu0 %v916
        %v961 = vpop.f32.mrb[0].mxu0
        %v962 = vadd.f32 0.0, %v961
        %v963 = vpop.f32.mrb[0].mxu0
        %v964 = vadd.f32 0.0, %v963
        %v965 = vpop.f32.mrb[0].mxu0
        %v966 = vpop.f32.mrb[0].mxu0
        %967 = vdwg.mxu0
        %968 = vmatprep.subr.bf16.mxu0 0
        %969 = vmatpush1.bf16.msra.mxu0 %v925
        %970 = vmatprep.subr.bf16.mxu0 0
        %971 = vmatpush1.bf16.msra.mxu0 0
        %972 = vmatprep.subr.bf16.mxu0 0
        %973 = vmatpush1.bf16.msra.mxu0 0
        %974 = vmatprep.subr.bf16.mxu0 0
        %975 = vmatpush1.bf16.msra.mxu0 0
        %976 = vmatprep.subr.bf16.mxu0 0
        %977 = vmatpush1.bf16.msra.mxu0 0
        %978 = vmatprep.subr.bf16.mxu0 0
        %979 = vmatpush1.bf16.msra.mxu0 0
        %980 = vmatprep.subr.bf16.mxu0 0
        %981 = vmatpush1.bf16.msra.mxu0 0
        %982 = vmatprep.subr.bf16.mxu0 0
        %983 = vmatpush1.bf16.msra.mxu0 0
        %984 = vmatprep.subr.bf16.mxu0 0
        %985 = vmatpush1.bf16.msra.mxu0 0
        %986 = vmatprep.subr.bf16.mxu0 0
        %987 = vmatpush1.bf16.msra.mxu0 0
        %988 = vmatprep.subr.bf16.mxu0 0
        %989 = vmatpush1.bf16.msra.mxu0 0
        %990 = vmatprep.subr.bf16.mxu0 0
        %991 = vmatpush1.bf16.msra.mxu0 0
        %992 = vmatprep.subr.bf16.mxu0 0
        %993 = vmatpush1.bf16.msra.mxu0 0
        %994 = vmatprep.subr.bf16.mxu0 0
        %995 = vmatpush1.bf16.msra.mxu0 0
        %996 = vmatprep.subr.bf16.mxu0 0
        %997 = vmatpush1.bf16.msra.mxu0 0
        %998 = vmatprep.subr.bf16.mxu0 0
        %999 = vmatpush1.bf16.msra.mxu0 0
        %1000 = vmatprep.mubr.bf16.mxu0 0
        %1001 = vmatmul.mubr.bf16.gmra.mrb[0].mxu0 %v916
        %v1002 = vpop.f32.mrb[0].mxu0
        %v1003 = vadd.f32 0.0, %v1002
        %v1004 = vpop.f32.mrb[0].mxu0
        %v1005 = vpop.f32.mrb[0].mxu0
        %v1006 = vpop.f32.mrb[0].mxu0
        %1007 = vdwg.mxu0
        %v1008 = vadd.f32 %v901, %v962
        %v1009 = vadd.f32 %v902, %v964
        %v1010 = vadd.f32 %v903, %v1003
        %s1011 = scalar_lea.vmem [#allocation9], 24
        %v1012 = vld [vmem:[%s1011] sm:$0xf]
        %1013 = vrot.lane.b32.xlu0 %v383, 122
        %v1014 = vpop.permute.xlu0 %1013
        %1015 = vrot.lane.b32.xlu0 %v384, 122
        %v1016 = vpop.permute.xlu0 %1015
        %1017 = vrot.lane.b32.xlu0 %v385, 122
        %v1018 = vpop.permute.xlu0 %1017
        %vm1019 = vcmask 998400
        %v1020 = vsel %vm1019, %v1014, %v1016
        %v1021 = vsel %vm1019, %v1016, %v1018
        %v1023 = vsel %vm395, %v1012, 0
        %v1026 = vsel %vm399, %v1020, 0
        %v1029 = vsel %vm399, %v1021, 0
        %v1032 = vsel %vm399, %v1018, 0
        %1034 = vmatprep.subr.bf16.mxu0 %v1029
        %1035 = vmatpush1.bf16.msra.mxu0 %v1026
        %1036 = vmatprep.subr.bf16.mxu0 0
        %1037 = vmatpush1.bf16.msra.mxu0 0
        %1038 = vmatprep.subr.bf16.mxu0 0
        %1039 = vmatpush1.bf16.msra.mxu0 0
        %1040 = vmatprep.subr.bf16.mxu0 0
        %1041 = vmatpush1.bf16.msra.mxu0 0
        %1042 = vmatprep.subr.bf16.mxu0 0
        %1043 = vmatpush1.bf16.msra.mxu0 0
        %1044 = vmatprep.subr.bf16.mxu0 0
        %1045 = vmatpush1.bf16.msra.mxu0 0
        %1046 = vmatprep.subr.bf16.mxu0 0
        %1047 = vmatpush1.bf16.msra.mxu0 0
        %1048 = vmatprep.subr.bf16.mxu0 0
        %1049 = vmatpush1.bf16.msra.mxu0 0
        %1050 = vmatprep.subr.bf16.mxu0 0
        %1051 = vmatpush1.bf16.msra.mxu0 0
        %1052 = vmatprep.subr.bf16.mxu0 0
        %1053 = vmatpush1.bf16.msra.mxu0 0
        %1054 = vmatprep.subr.bf16.mxu0 0
        %1055 = vmatpush1.bf16.msra.mxu0 0
        %1056 = vmatprep.subr.bf16.mxu0 0
        %1057 = vmatpush1.bf16.msra.mxu0 0
        %1058 = vmatprep.subr.bf16.mxu0 0
        %1059 = vmatpush1.bf16.msra.mxu0 0
        %1060 = vmatprep.subr.bf16.mxu0 0
        %1061 = vmatpush1.bf16.msra.mxu0 0
        %1062 = vmatprep.subr.bf16.mxu0 0
        %1063 = vmatpush1.bf16.msra.mxu0 0
        %1064 = vmatprep.subr.bf16.mxu0 0
        %1065 = vmatpush1.bf16.msra.mxu0 0
        %1066 = vmatprep.mubr.bf16.mxu0 0
        %1067 = vmatmul.mubr.bf16.gmra.mrb[0].mxu0 %v1023
        %v1068 = vpop.f32.mrb[0].mxu0
        %v1069 = vadd.f32 0.0, %v1068
        %v1070 = vpop.f32.mrb[0].mxu0
        %v1071 = vadd.f32 0.0, %v1070
        %v1072 = vpop.f32.mrb[0].mxu0
        %v1073 = vpop.f32.mrb[0].mxu0
        %1074 = vdwg.mxu0
        %1075 = vmatprep.subr.bf16.mxu0 0
        %1076 = vmatpush1.bf16.msra.mxu0 %v1032
        %1077 = vmatprep.subr.bf16.mxu0 0
        %1078 = vmatpush1.bf16.msra.mxu0 0
        %1079 = vmatprep.subr.bf16.mxu0 0
        %1080 = vmatpush1.bf16.msra.mxu0 0
        %1081 = vmatprep.subr.bf16.mxu0 0
        %1082 = vmatpush1.bf16.msra.mxu0 0
        %1083 = vmatprep.subr.bf16.mxu0 0
        %1084 = vmatpush1.bf16.msra.mxu0 0
        %1085 = vmatprep.subr.bf16.mxu0 0
        %1086 = vmatpush1.bf16.msra.mxu0 0
        %1087 = vmatprep.subr.bf16.mxu0 0
        %1088 = vmatpush1.bf16.msra.mxu0 0
        %1089 = vmatprep.subr.bf16.mxu0 0
        %1090 = vmatpush1.bf16.msra.mxu0 0
        %1091 = vmatprep.subr.bf16.mxu0 0
        %1092 = vmatpush1.bf16.msra.mxu0 0
        %1093 = vmatprep.subr.bf16.mxu0 0
        %1094 = vmatpush1.bf16.msra.mxu0 0
        %1095 = vmatprep.subr.bf16.mxu0 0
        %1096 = vmatpush1.bf16.msra.mxu0 0
        %1097 = vmatprep.subr.bf16.mxu0 0
        %1098 = vmatpush1.bf16.msra.mxu0 0
        %1099 = vmatprep.subr.bf16.mxu0 0
        %1100 = vmatpush1.bf16.msra.mxu0 0
        %1101 = vmatprep.subr.bf16.mxu0 0
        %1102 = vmatpush1.bf16.msra.mxu0 0
        %1103 = vmatprep.subr.bf16.mxu0 0
        %1104 = vmatpush1.bf16.msra.mxu0 0
        %1105 = vmatprep.subr.bf16.mxu0 0
        %1106 = vmatpush1.bf16.msra.mxu0 0
        %1107 = vmatprep.mubr.bf16.mxu0 0
        %1108 = vmatmul.mubr.bf16.gmra.mrb[0].mxu0 %v1023
        %v1109 = vpop.f32.mrb[0].mxu0
        %v1110 = vadd.f32 0.0, %v1109
        %v1111 = vpop.f32.mrb[0].mxu0
        %v1112 = vpop.f32.mrb[0].mxu0
        %v1113 = vpop.f32.mrb[0].mxu0
        %1114 = vdwg.mxu0
        %v1115 = vadd.f32 %v1008, %v1069
        %v1116 = vadd.f32 %v1009, %v1071
        %v1117 = vadd.f32 %v1010, %v1110
        %v1118 = vld [vmem:[%s3] sm:$0xff]
        %1120 = vset.pattern.permute.xlu0 0
        %1121 = vperm.xlu0 %1120, %v1118
        %v1122 = vpop.permute.xlu0 %1121
        %v1124 = vadd.f32 %v1115, %v1122
        %v1125 = vadd.f32 %v1116, %v1122
        %v1126 = vadd.f32 %v1117, %v1122
        %v1127 = vmax.f32 %v1124, 0.0
        %v1128 = vmax.f32 %v1125, 0.0
        %v1129 = vmax.f32 %v1126, 0.0
        %v1130 = vpack.c.bf16 %v1127, %v1127
        %v1131 = vpack.c.bf16 %v1128, %v1128
        %v1132 = vpack.c.bf16 %v1129, %v1129
        %v1136 = vunpack.c.l.b16 %v1130
        %v1137 = vunpack.c.l.b16 %v1131
        %v1138 = vunpack.c.l.b16 %v1132
        %v1139 = vpack.c.b16 %v1137, %v1136
        %v1140 = vpack.c.b16 %v1138, %v1138
        %1143 = vst [vmem:[#allocation3] sm:$0xff] %v1139
        %1144 = vst.msk [vmem:[#allocation3 + $0x8] sm:$0xf] %vm346, %v1140
        %p1145 = scmp.eq.s32.totalorder %s31, 0
        // Predicated region
        $region57: #{tpu_custom_call.1} parent=43 // pred_check
          %p1146 = pneg %p1145
        $region58: #{tpu_custom_call.1} parent=43 // pred_check_branch
          %1148 = sbr.rel (%p1146) target = $region60
        $region59: #{tpu_custom_call.1} parent=43 // pred_region
          %vm1149 = vcmask 19456
          %1150 = vst.msk [vmem:[#allocation3] sm:$0xf] %vm1149, 0
        $region60: #{tpu_custom_call.1} parent=43 // pred_fallthru
          _
        %p1151 = scmp.eq.s32.totalorder %s31, 1
        // Predicated region
        $region61: #{tpu_custom_call.1} parent=43 // pred_check
          %p1152 = pneg %p1151
        $region62: #{tpu_custom_call.1} parent=43 // pred_check_branch
          %1154 = sbr.rel (%p1152) target = $region64
        $region63: #{tpu_custom_call.1} parent=43 // pred_region
          %vm1155 = vcmask 44056
          %1156 = vst.msk [vmem:[#allocation3 + $0x8] sm:$0xf] %vm1155, 0
        $region64: #{tpu_custom_call.1} parent=43 // pred_fallthru
          _
        %v1157 = vld [vmem:[%s4] sm:$0xf]
        %v1158 = vld [vmem:[#allocation3] sm:$0xff]
        %s1159 = scalar_lea.vmem %s4, 4
        %v1160 = vld [vmem:[%s1159] sm:$0xf]
        %v1161 = vld [vmem:[#allocation3 + $0x8] sm:$0xf]
        %v1164 = vunpack.c.l.b16 %v1158
        %v1165 = vunpack.c.h.b16 %v1158
        %v1166 = vunpack.c.l.b16 %v1161
        %v1167 = vpack.c.b16 %v1164, %v1164
        %v1168 = vpack.c.b16 %v1165, %v1165
        %v1169 = vpack.c.b16 %v1166, %v1166
        %1170 = vrot.lane.b32.xlu0 %v1167, 127
        %v1171 = vpop.permute.xlu0 %1170
        %1172 = vrot.lane.b32.xlu0 %v1168, 127
        %v1173 = vpop.permute.xlu0 %1172
        %1174 = vrot.lane.b32.xlu0 %v1169, 127
        %v1175 = vpop.permute.xlu0 %1174
        %v1176 = vsel %vm392, %v1171, %v1173
        %v1177 = vsel %vm392, %v1173, %v1175
        %v1179 = vsel %vm395, %v1160, 0
        %v1182 = vsel %vm399, %v1176, 0
        %v1185 = vsel %vm399, %v1177, 0
        %1187 = vmatprep.subr.bf16.mxu0 %v1185
        %1188 = vmatpush1.bf16.msra.mxu0 %v1182
        %1189 = vmatprep.subr.bf16.mxu0 0
        %1190 = vmatpush1.bf16.msra.mxu0 0
        %1191 = vmatprep.subr.bf16.mxu0 0
        %1192 = vmatpush1.bf16.msra.mxu0 0
        %1193 = vmatprep.subr.bf16.mxu0 0
        %1194 = vmatpush1.bf16.msra.mxu0 0
        %1195 = vmatprep.subr.bf16.mxu0 0
        %1196 = vmatpush1.bf16.msra.mxu0 0
        %1197 = vmatprep.subr.bf16.mxu0 0
        %1198 = vmatpush1.bf16.msra.mxu0 0
        %1199 = vmatprep.subr.bf16.mxu0 0
        %1200 = vmatpush1.bf16.msra.mxu0 0
        %1201 = vmatprep.subr.bf16.mxu0 0
        %1202 = vmatpush1.bf16.msra.mxu0 0
        %1203 = vmatprep.subr.bf16.mxu0 0
        %1204 = vmatpush1.bf16.msra.mxu0 0
        %1205 = vmatprep.subr.bf16.mxu0 0
        %1206 = vmatpush1.bf16.msra.mxu0 0
        %1207 = vmatprep.subr.bf16.mxu0 0
        %1208 = vmatpush1.bf16.msra.mxu0 0
        %1209 = vmatprep.subr.bf16.mxu0 0
        %1210 = vmatpush1.bf16.msra.mxu0 0
        %1211 = vmatprep.subr.bf16.mxu0 0
        %1212 = vmatpush1.bf16.msra.mxu0 0
        %1213 = vmatprep.subr.bf16.mxu0 0
        %1214 = vmatpush1.bf16.msra.mxu0 0
        %1215 = vmatprep.subr.bf16.mxu0 0
        %1216 = vmatpush1.bf16.msra.mxu0 0
        %1217 = vmatprep.subr.bf16.mxu0 0
        %1218 = vmatpush1.bf16.msra.mxu0 0
        %1219 = vmatprep.mubr.bf16.mxu0 0
        %1220 = vmatmul.mubr.bf16.gmra.mrb[0].mxu0 %v1179
        %v1221 = vpop.f32.mrb[0].mxu0
        %v1222 = vadd.f32 0.0, %v1221
        %v1223 = vpop.f32.mrb[0].mxu0
        %v1224 = vadd.f32 0.0, %v1223
        %v1225 = vpop.f32.mrb[0].mxu0
        %v1226 = vpop.f32.mrb[0].mxu0
        %1227 = vdwg.mxu0
        %v1229 = vsel %vm395, %v1157, 0
        %v1232 = vsel %vm399, %v1167, 0
        %v1235 = vsel %vm399, %v1168, 0
        %1237 = vmatprep.subr.bf16.mxu0 %v1235
        %1238 = vmatpush1.bf16.msra.mxu0 %v1232
        %1239 = vmatprep.subr.bf16.mxu0 0
        %1240 = vmatpush1.bf16.msra.mxu0 0
        %1241 = vmatprep.subr.bf16.mxu0 0
        %1242 = vmatpush1.bf16.msra.mxu0 0
        %1243 = vmatprep.subr.bf16.mxu0 0
        %1244 = vmatpush1.bf16.msra.mxu0 0
        %1245 = vmatprep.subr.bf16.mxu0 0
        %1246 = vmatpush1.bf16.msra.mxu0 0
        %1247 = vmatprep.subr.bf16.mxu0 0
        %1248 = vmatpush1.bf16.msra.mxu0 0
        %1249 = vmatprep.subr.bf16.mxu0 0
        %1250 = vmatpush1.bf16.msra.mxu0 0
        %1251 = vmatprep.subr.bf16.mxu0 0
        %1252 = vmatpush1.bf16.msra.mxu0 0
        %1253 = vmatprep.subr.bf16.mxu0 0
        %1254 = vmatpush1.bf16.msra.mxu0 0
        %1255 = vmatprep.subr.bf16.mxu0 0
        %1256 = vmatpush1.bf16.msra.mxu0 0
        %1257 = vmatprep.subr.bf16.mxu0 0
        %1258 = vmatpush1.bf16.msra.mxu0 0
        %1259 = vmatprep.subr.bf16.mxu0 0
        %1260 = vmatpush1.bf16.msra.mxu0 0
        %1261 = vmatprep.subr.bf16.mxu0 0
        %1262 = vmatpush1.bf16.msra.mxu0 0
        %1263 = vmatprep.subr.bf16.mxu0 0
        %1264 = vmatpush1.bf16.msra.mxu0 0
        %1265 = vmatprep.subr.bf16.mxu0 0
        %1266 = vmatpush1.bf16.msra.mxu0 0
        %1267 = vmatprep.subr.bf16.mxu0 0
        %1268 = vmatpush1.bf16.msra.mxu0 0
        %1269 = vmatprep.mubr.bf16.mxu0 0
        %1270 = vmatmul.mubr.bf16.gmra.mrb[0].mxu0 %v1229
        %v1271 = vpop.f32.mrb[0].mxu0
        %v1272 = vadd.f32 %v1222, %v1271
        %v1273 = vpop.f32.mrb[0].mxu0
        %v1274 = vadd.f32 %v1224, %v1273
        %v1275 = vpop.f32.mrb[0].mxu0
        %v1276 = vpop.f32.mrb[0].mxu0
        %1277 = vdwg.mxu0
        %s1278 = scalar_lea.vmem %s4, 8
        %v1279 = vld [vmem:[%s1278] sm:$0xf]
        %1280 = vrot.lane.b32.xlu0 %v1167, 126
        %v1281 = vpop.permute.xlu0 %1280
        %1282 = vrot.lane.b32.xlu0 %v1168, 126
        %v1283 = vpop.permute.xlu0 %1282
        %1284 = vrot.lane.b32.xlu0 %v1169, 126
        %v1285 = vpop.permute.xlu0 %1284
        %v1286 = vsel %vm591, %v1281, %v1283
        %v1287 = vsel %vm591, %v1283, %v1285
        %v1289 = vsel %vm395, %v1279, 0
        %v1292 = vsel %vm399, %v1286, 0
        %v1295 = vsel %vm399, %v1287, 0
        %1297 = vmatprep.subr.bf16.mxu0 %v1295
        %1298 = vmatpush1.bf16.msra.mxu0 %v1292
        %1299 = vmatprep.subr.bf16.mxu0 0
        %1300 = vmatpush1.bf16.msra.mxu0 0
        %1301 = vmatprep.subr.bf16.mxu0 0
        %1302 = vmatpush1.bf16.msra.mxu0 0
        %1303 = vmatprep.subr.bf16.mxu0 0
        %1304 = vmatpush1.bf16.msra.mxu0 0
        %1305 = vmatprep.subr.bf16.mxu0 0
        %1306 = vmatpush1.bf16.msra.mxu0 0
        %1307 = vmatprep.subr.bf16.mxu0 0
        %1308 = vmatpush1.bf16.msra.mxu0 0
        %1309 = vmatprep.subr.bf16.mxu0 0
        %1310 = vmatpush1.bf16.msra.mxu0 0
        %1311 = vmatprep.subr.bf16.mxu0 0
        %1312 = vmatpush1.bf16.msra.mxu0 0
        %1313 = vmatprep.subr.bf16.mxu0 0
        %1314 = vmatpush1.bf16.msra.mxu0 0
        %1315 = vmatprep.subr.bf16.mxu0 0
        %1316 = vmatpush1.bf16.msra.mxu0 0
        %1317 = vmatprep.subr.bf16.mxu0 0
        %1318 = vmatpush1.bf16.msra.mxu0 0
        %1319 = vmatprep.subr.bf16.mxu0 0
        %1320 = vmatpush1.bf16.msra.mxu0 0
        %1321 = vmatprep.subr.bf16.mxu0 0
        %1322 = vmatpush1.bf16.msra.mxu0 0
        %1323 = vmatprep.subr.bf16.mxu0 0
        %1324 = vmatpush1.bf16.msra.mxu0 0
        %1325 = vmatprep.subr.bf16.mxu0 0
        %1326 = vmatpush1.bf16.msra.mxu0 0
        %1327 = vmatprep.subr.bf16.mxu0 0
        %1328 = vmatpush1.bf16.msra.mxu0 0
        %1329 = vmatprep.mubr.bf16.mxu0 0
        %1330 = vmatmul.mubr.bf16.gmra.mrb[0].mxu0 %v1289
        %v1331 = vpop.f32.mrb[0].mxu0
        %v1332 = vadd.f32 0.0, %v1331
        %v1333 = vpop.f32.mrb[0].mxu0
        %v1334 = vadd.f32 0.0, %v1333
        %v1335 = vpop.f32.mrb[0].mxu0
        %v1336 = vpop.f32.mrb[0].mxu0
        %1337 = vdwg.mxu0
        %v1338 = vadd.f32 %v1272, %v1332
        %v1339 = vadd.f32 %v1274, %v1334
        %s1340 = scalar_lea.vmem %s4, 12
        %v1341 = vld [vmem:[%s1340] sm:$0xf]
        %1342 = vrot.lane.b32.xlu0 %v1167, 125
        %v1343 = vpop.permute.xlu0 %1342
        %1344 = vrot.lane.b32.xlu0 %v1168, 125
        %v1345 = vpop.permute.xlu0 %1344
        %1346 = vrot.lane.b32.xlu0 %v1169, 125
        %v1347 = vpop.permute.xlu0 %1346
        %v1348 = vsel %vm698, %v1343, %v1345
        %v1349 = vsel %vm698, %v1345, %v1347
        %v1351 = vsel %vm395, %v1341, 0
        %v1354 = vsel %vm399, %v1348, 0
        %v1357 = vsel %vm399, %v1349, 0
        %1359 = vmatprep.subr.bf16.mxu0 %v1357
        %1360 = vmatpush1.bf16.msra.mxu0 %v1354
        %1361 = vmatprep.subr.bf16.mxu0 0
        %1362 = vmatpush1.bf16.msra.mxu0 0
        %1363 = vmatprep.subr.bf16.mxu0 0
        %1364 = vmatpush1.bf16.msra.mxu0 0
        %1365 = vmatprep.subr.bf16.mxu0 0
        %1366 = vmatpush1.bf16.msra.mxu0 0
        %1367 = vmatprep.subr.bf16.mxu0 0
        %1368 = vmatpush1.bf16.msra.mxu0 0
        %1369 = vmatprep.subr.bf16.mxu0 0
        %1370 = vmatpush1.bf16.msra.mxu0 0
        %1371 = vmatprep.subr.bf16.mxu0 0
        %1372 = vmatpush1.bf16.msra.mxu0 0
        %1373 = vmatprep.subr.bf16.mxu0 0
        %1374 = vmatpush1.bf16.msra.mxu0 0
        %1375 = vmatprep.subr.bf16.mxu0 0
        %1376 = vmatpush1.bf16.msra.mxu0 0
        %1377 = vmatprep.subr.bf16.mxu0 0
        %1378 = vmatpush1.bf16.msra.mxu0 0
        %1379 = vmatprep.subr.bf16.mxu0 0
        %1380 = vmatpush1.bf16.msra.mxu0 0
        %1381 = vmatprep.subr.bf16.mxu0 0
        %1382 = vmatpush1.bf16.msra.mxu0 0
        %1383 = vmatprep.subr.bf16.mxu0 0
        %1384 = vmatpush1.bf16.msra.mxu0 0
        %1385 = vmatprep.subr.bf16.mxu0 0
        %1386 = vmatpush1.bf16.msra.mxu0 0
        %1387 = vmatprep.subr.bf16.mxu0 0
        %1388 = vmatpush1.bf16.msra.mxu0 0
        %1389 = vmatprep.subr.bf16.mxu0 0
        %1390 = vmatpush1.bf16.msra.mxu0 0
        %1391 = vmatprep.mubr.bf16.mxu0 0
        %1392 = vmatmul.mubr.bf16.gmra.mrb[0].mxu0 %v1351
        %v1393 = vpop.f32.mrb[0].mxu0
        %v1394 = vadd.f32 0.0, %v1393
        %v1395 = vpop.f32.mrb[0].mxu0
        %v1396 = vadd.f32 0.0, %v1395
        %v1397 = vpop.f32.mrb[0].mxu0
        %v1398 = vpop.f32.mrb[0].mxu0
        %1399 = vdwg.mxu0
        %v1400 = vadd.f32 %v1338, %v1394
        %v1401 = vadd.f32 %v1339, %v1396
        %s1402 = scalar_lea.vmem %s4, 16
        %v1403 = vld [vmem:[%s1402] sm:$0xf]
        %1404 = vrot.lane.b32.xlu0 %v1167, 124
        %v1405 = vpop.permute.xlu0 %1404
        %1406 = vrot.lane.b32.xlu0 %v1168, 124
        %v1407 = vpop.permute.xlu0 %1406
        %1408 = vrot.lane.b32.xlu0 %v1169, 124
        %v1409 = vpop.permute.xlu0 %1408
        %v1410 = vsel %vm805, %v1405, %v1407
        %v1411 = vsel %vm805, %v1407, %v1409
        %v1413 = vsel %vm395, %v1403, 0
        %v1416 = vsel %vm399, %v1410, 0
        %v1419 = vsel %vm399, %v1411, 0
        %1421 = vmatprep.subr.bf16.mxu0 %v1419
        %1422 = vmatpush1.bf16.msra.mxu0 %v1416
        %1423 = vmatprep.subr.bf16.mxu0 0
        %1424 = vmatpush1.bf16.msra.mxu0 0
        %1425 = vmatprep.subr.bf16.mxu0 0
        %1426 = vmatpush1.bf16.msra.mxu0 0
        %1427 = vmatprep.subr.bf16.mxu0 0
        %1428 = vmatpush1.bf16.msra.mxu0 0
        %1429 = vmatprep.subr.bf16.mxu0 0
        %1430 = vmatpush1.bf16.msra.mxu0 0
        %1431 = vmatprep.subr.bf16.mxu0 0
        %1432 = vmatpush1.bf16.msra.mxu0 0
        %1433 = vmatprep.subr.bf16.mxu0 0
        %1434 = vmatpush1.bf16.msra.mxu0 0
        %1435 = vmatprep.subr.bf16.mxu0 0
        %1436 = vmatpush1.bf16.msra.mxu0 0
        %1437 = vmatprep.subr.bf16.mxu0 0
        %1438 = vmatpush1.bf16.msra.mxu0 0
        %1439 = vmatprep.subr.bf16.mxu0 0
        %1440 = vmatpush1.bf16.msra.mxu0 0
        %1441 = vmatprep.subr.bf16.mxu0 0
        %1442 = vmatpush1.bf16.msra.mxu0 0
        %1443 = vmatprep.subr.bf16.mxu0 0
        %1444 = vmatpush1.bf16.msra.mxu0 0
        %1445 = vmatprep.subr.bf16.mxu0 0
        %1446 = vmatpush1.bf16.msra.mxu0 0
        %1447 = vmatprep.subr.bf16.mxu0 0
        %1448 = vmatpush1.bf16.msra.mxu0 0
        %1449 = vmatprep.subr.bf16.mxu0 0
        %1450 = vmatpush1.bf16.msra.mxu0 0
        %1451 = vmatprep.subr.bf16.mxu0 0
        %1452 = vmatpush1.bf16.msra.mxu0 0
        %1453 = vmatprep.mubr.bf16.mxu0 0
        %1454 = vmatmul.mubr.bf16.gmra.mrb[0].mxu0 %v1413
        %v1455 = vpop.f32.mrb[0].mxu0
        %v1456 = vadd.f32 0.0, %v1455
        %v1457 = vpop.f32.mrb[0].mxu0
        %v1458 = vadd.f32 0.0, %v1457
        %v1459 = vpop.f32.mrb[0].mxu0
        %v1460 = vpop.f32.mrb[0].mxu0
        %1461 = vdwg.mxu0
        %v1462 = vadd.f32 %v1400, %v1456
        %v1463 = vadd.f32 %v1401, %v1458
        %s1464 = scalar_lea.vmem %s4, 20
        %v1465 = vld [vmem:[%s1464] sm:$0xf]
        %1466 = vrot.lane.b32.xlu0 %v1167, 123
        %v1467 = vpop.permute.xlu0 %1466
        %1468 = vrot.lane.b32.xlu0 %v1168, 123
        %v1469 = vpop.permute.xlu0 %1468
        %1470 = vrot.lane.b32.xlu0 %v1169, 123
        %v1471 = vpop.permute.xlu0 %1470
        %v1472 = vsel %vm912, %v1467, %v1469
        %v1473 = vsel %vm912, %v1469, %v1471
        %v1475 = vsel %vm395, %v1465, 0
        %v1478 = vsel %vm399, %v1472, 0
        %v1481 = vsel %vm399, %v1473, 0
        %1483 = vmatprep.subr.bf16.mxu0 %v1481
        %1484 = vmatpush1.bf16.msra.mxu0 %v1478
        %1485 = vmatprep.subr.bf16.mxu0 0
        %1486 = vmatpush1.bf16.msra.mxu0 0
        %1487 = vmatprep.subr.bf16.mxu0 0
        %1488 = vmatpush1.bf16.msra.mxu0 0
        %1489 = vmatprep.subr.bf16.mxu0 0
        %1490 = vmatpush1.bf16.msra.mxu0 0
        %1491 = vmatprep.subr.bf16.mxu0 0
        %1492 = vmatpush1.bf16.msra.mxu0 0
        %1493 = vmatprep.subr.bf16.mxu0 0
        %1494 = vmatpush1.bf16.msra.mxu0 0
        %1495 = vmatprep.subr.bf16.mxu0 0
        %1496 = vmatpush1.bf16.msra.mxu0 0
        %1497 = vmatprep.subr.bf16.mxu0 0
        %1498 = vmatpush1.bf16.msra.mxu0 0
        %1499 = vmatprep.subr.bf16.mxu0 0
        %1500 = vmatpush1.bf16.msra.mxu0 0
        %1501 = vmatprep.subr.bf16.mxu0 0
        %1502 = vmatpush1.bf16.msra.mxu0 0
        %1503 = vmatprep.subr.bf16.mxu0 0
        %1504 = vmatpush1.bf16.msra.mxu0 0
        %1505 = vmatprep.subr.bf16.mxu0 0
        %1506 = vmatpush1.bf16.msra.mxu0 0
        %1507 = vmatprep.subr.bf16.mxu0 0
        %1508 = vmatpush1.bf16.msra.mxu0 0
        %1509 = vmatprep.subr.bf16.mxu0 0
        %1510 = vmatpush1.bf16.msra.mxu0 0
        %1511 = vmatprep.subr.bf16.mxu0 0
        %1512 = vmatpush1.bf16.msra.mxu0 0
        %1513 = vmatprep.subr.bf16.mxu0 0
        %1514 = vmatpush1.bf16.msra.mxu0 0
        %1515 = vmatprep.mubr.bf16.mxu0 0
        %1516 = vmatmul.mubr.bf16.gmra.mrb[0].mxu0 %v1475
        %v1517 = vpop.f32.mrb[0].mxu0
        %v1518 = vadd.f32 0.0, %v1517
        %v1519 = vpop.f32.mrb[0].mxu0
        %v1520 = vadd.f32 0.0, %v1519
        %v1521 = vpop.f32.mrb[0].mxu0
        %v1522 = vpop.f32.mrb[0].mxu0
        %1523 = vdwg.mxu0
        %v1524 = vadd.f32 %v1462, %v1518
        %v1525 = vadd.f32 %v1463, %v1520
        %s1526 = scalar_lea.vmem %s4, 24
        %v1527 = vld [vmem:[%s1526] sm:$0xf]
        %1528 = vrot.lane.b32.xlu0 %v1167, 122
        %v1529 = vpop.permute.xlu0 %1528
        %1530 = vrot.lane.b32.xlu0 %v1168, 122
        %v1531 = vpop.permute.xlu0 %1530
        %1532 = vrot.lane.b32.xlu0 %v1169, 122
        %v1533 = vpop.permute.xlu0 %1532
        %v1534 = vsel %vm1019, %v1529, %v1531
        %v1535 = vsel %vm1019, %v1531, %v1533
        %v1537 = vsel %vm395, %v1527, 0
        %v1540 = vsel %vm399, %v1534, 0
        %v1543 = vsel %vm399, %v1535, 0
        %1545 = vmatprep.subr.bf16.mxu0 %v1543
        %1546 = vmatpush1.bf16.msra.mxu0 %v1540
        %1547 = vmatprep.subr.bf16.mxu0 0
        %1548 = vmatpush1.bf16.msra.mxu0 0
        %1549 = vmatprep.subr.bf16.mxu0 0
        %1550 = vmatpush1.bf16.msra.mxu0 0
        %1551 = vmatprep.subr.bf16.mxu0 0
        %1552 = vmatpush1.bf16.msra.mxu0 0
        %1553 = vmatprep.subr.bf16.mxu0 0
        %1554 = vmatpush1.bf16.msra.mxu0 0
        %1555 = vmatprep.subr.bf16.mxu0 0
        %1556 = vmatpush1.bf16.msra.mxu0 0
        %1557 = vmatprep.subr.bf16.mxu0 0
        %1558 = vmatpush1.bf16.msra.mxu0 0
        %1559 = vmatprep.subr.bf16.mxu0 0
        %1560 = vmatpush1.bf16.msra.mxu0 0
        %1561 = vmatprep.subr.bf16.mxu0 0
        %1562 = vmatpush1.bf16.msra.mxu0 0
        %1563 = vmatprep.subr.bf16.mxu0 0
        %1564 = vmatpush1.bf16.msra.mxu0 0
        %1565 = vmatprep.subr.bf16.mxu0 0
        %1566 = vmatpush1.bf16.msra.mxu0 0
        %1567 = vmatprep.subr.bf16.mxu0 0
        %1568 = vmatpush1.bf16.msra.mxu0 0
        %1569 = vmatprep.subr.bf16.mxu0 0
        %1570 = vmatpush1.bf16.msra.mxu0 0
        %1571 = vmatprep.subr.bf16.mxu0 0
        %1572 = vmatpush1.bf16.msra.mxu0 0
        %1573 = vmatprep.subr.bf16.mxu0 0
        %1574 = vmatpush1.bf16.msra.mxu0 0
        %1575 = vmatprep.subr.bf16.mxu0 0
        %1576 = vmatpush1.bf16.msra.mxu0 0
        %1577 = vmatprep.mubr.bf16.mxu0 0
        %1578 = vmatmul.mubr.bf16.gmra.mrb[0].mxu0 %v1537
        %v1579 = vpop.f32.mrb[0].mxu0
        %v1580 = vadd.f32 0.0, %v1579
        %v1581 = vpop.f32.mrb[0].mxu0
        %v1582 = vadd.f32 0.0, %v1581
        %v1583 = vpop.f32.mrb[0].mxu0
        %v1584 = vpop.f32.mrb[0].mxu0
        %1585 = vdwg.mxu0
        %v1586 = vadd.f32 %v1524, %v1580
        %v1587 = vadd.f32 %v1525, %v1582
        %v1588 = vld [vmem:[%s5] sm:$0xff]
        %1590 = vset.pattern.permute.xlu0 0
        %1591 = vperm.xlu0 %1590, %v1588
        %v1592 = vpop.permute.xlu0 %1591
        %v1594 = vadd.f32 %v1586, %v1592
        %v1595 = vadd.f32 %v1587, %v1592
        %v1596 = vld [vmem:[%s294] sm:$0xff]
        %v1597 = vld [vmem:[%s294 + $0x8] sm:$0xff]
        %v1598 = vadd.f32 %v1594, %v1596
        %v1599 = vadd.f32 %v1595, %v1597
        %v1600 = vmax.f32 %v1598, 0.0
        %v1601 = vmax.f32 %v1599, 0.0
        %1602 = vst [vmem:[%s340] sm:$0xff] %v1600
        %1603 = vst [vmem:[%s340 + $0x8] sm:$0xff] %v1601
        %s1604 = sand.u32 %s188, 1
        %s1605 = scalar_lea.sflag [#allocation6], %s1604
        %s1606 = sand.u32 %s188, 1
        %s1607 = smul.addr %s1606, 16
        %s1608 = scalar_lea.vmem [#allocation10], %s1607
        // Predicated region
        $region65: #{tpu_custom_call.1} parent=43 // pred_check
          %p1609 = pneg %p198
        $region66: #{tpu_custom_call.1} parent=43 // pred_check_branch
          %1611 = sbr.rel (%p1609) target = $region68
        $region67: #{tpu_custom_call.1} parent=43 // pred_region
          %s1612 = smul.u32 2, %s31
          %s1614 = ssub.s32 256, 256
          %1615 = vsyncadd %s1605, %s1614
          %s1616 = smul.addr %s30, 4
          %s1617 = sadd.s32 %s1612, %s1616
          %s1618 = smul.addr %s1617, 128
          %s1619 = scalar_lea.hbm %s6, %s1618
          %s1621 = sshll.u32 %s1608, 4
          %s1622 = int_to_ptr.vmem [resolvable:$true] %s1621
          %1624 = dma.vmem_to_hbm [thread:$0]  %s1622, 256, %s1619, %s1605
        $region68: #{tpu_custom_call.1} parent=43 // pred_fallthru
          _
      $region44: #{tpu_custom_call.1} parent=5 // pred_fallthru
        _
      %p1625 = scmp.le.s32.totalorder 2, %s21
      // Predicated region
      $region69: #{tpu_custom_call.1} parent=5 // pred_check
        %p1626 = pneg %p1625
      $region70: #{tpu_custom_call.1} parent=5 // pred_check_branch
        %1628 = sbr.rel (%p1626) target = $region72
      $region71: #{tpu_custom_call.1} parent=5 // pred_region
        %s1629 = ssub.s32 %s21, 2
        // Predicated region
        $region73: #{tpu_custom_call.1} parent=71 // pred_check
          %p1630 = pneg %p204
        $region74: #{tpu_custom_call.1} parent=71 // pred_check_branch
          %1632 = sbr.rel (%p1630) target = $region76
        $region75: #{tpu_custom_call.1} parent=71 // pred_region
          %s1633 = sand.u32 %s189, 1
          %s1634 = scalar_lea.sflag [#allocation6], %s1633
          %s1635 = sand.u32 %s189, 1
          %s1636 = smul.addr %s1635, 16
          %s1637 = scalar_lea.vmem [#allocation10], %s1636
          %1638 = dma.done %s1634, 256
        $region76: #{tpu_custom_call.1} parent=71 // pred_fallthru
          _
      $region72: #{tpu_custom_call.1} parent=5 // pred_fallthru
        _
    $region6: #{tpu_custom_call.1} parent=1 // loop_footer
      %s25 = sadd.s32 1, %s21
    $region7: #{tpu_custom_call.1} parent=1 // loop_footer_branch
      %20 = sbr.rel target = $region3
    $region8: #{tpu_custom_call.1} parent=1 // loop_exit
      _
    %1639 = vsyncpa [#allocation5], 1
    %s1640 = scalar_lea.sflag [#allocation5], 1
    %1641 = vsyncpa %s1640, 1
    %1642 = vsyncpa [#allocation8], 1
    %s1643 = scalar_lea.sflag [#allocation8], 1
    %1644 = vsyncpa %s1643, 1
    %1645 = vsyncpa [#allocation6], 1
    %s1646 = scalar_lea.sflag [#allocation6], 1
    %1647 = vsyncpa %s1646, 1

</llo_original>
